<compile_context>
chip_gen: v7x
topology: tpu7x:2x2x1
jax: 0.10.0
libtpu: 0.0.40
codegen_flags: <defaults>
</compile_context>

<pallas_src>
import functools

import jax
import jax.numpy as jnp
from jax.experimental import pallas as pl
from jax.experimental.pallas import tpu as pltpu


def _self_attention_kernel(x_ref, w_ref, u_ref, gb_ref, gamma_ref, out_ref,
                           xc_cache, v_cache, s_cache, *,
                           C, tq, compute_dtype, exp_dtype, approx_recip):
    """Grid = (batch, query_tile); query axis is 'arbitrary' (per-batch cache).

    x_ref     : (1, C, N)   feature map for this batch element (f32); block
                            index depends only on b -> DMA'd once per batch.
    w_ref     : (2C, C)     stacked [Wv ; Wk^T Wq] weight (compute dtype)
    u_ref     : (C, 1)      fused query-bias term Wk^T bq (f32)
    gb_ref    : (C, 1)      gamma * bv, added after softmax normalization (f32)
    gamma_ref : (1, 1)      residual scale (SMEM scalar, f32)
    out_ref   : (1, C, TQ)  lane-dense output tile (f32)
    xc_cache  : (C, N)      per-batch cache of x in compute dtype
    v_cache   : (C, N)      per-batch cache of Wv.x (no bias)
    s_cache   : (C, N)      per-batch cache of (Wk^T Wq).x + Wk^T bq
    """
    qi = pl.program_id(1)
    N = x_ref.shape[2]

    # Per-batch precompute: one stacked MXU matmul + one f32->compute cast,
    # reused by every query tile of this batch element.
    @pl.when(qi == 0)
    def _():
        xc = x_ref[0].astype(compute_dtype)                              # (C, N)
        xc_cache[...] = xc
        proj = jnp.dot(w_ref[...], xc,
                       preferred_element_type=jnp.float32)               # (2C, N)
        v_cache[...] = proj[:C].astype(compute_dtype)
        s_cache[...] = (proj[C:] + u_ref[...]).astype(compute_dtype)

    # Query tile: static full view when the query axis is collapsed (the
    # shipped small-N configuration), aligned dynamic slice otherwise.
    if tq == N:
        s_tile = s_cache[...]                                            # (C, N)
        x_q = x_ref[0]                                                   # (C, N) f32
    else:
        col = pl.multiple_of(qi * tq, 128)
        s_tile = s_cache[:, pl.ds(col, tq)]                              # (C, TQ)
        x_q = x_ref[0, :, pl.ds(col, tq)]                                # (C, TQ) f32

    # energy^T[j, i] = sum_c x[c, j] * s[c, i]   (softmax axis j on sublanes).
    # TODO(synk): for the multi-tile large-N path, check the lowering for a
    # per-tile vxpose of xc_cache and hoist an explicit x^T into the per-batch
    # cache if one shows up.
    e_t = jax.lax.dot_general(
        xc_cache[...], s_tile,
        dimension_numbers=(((0,), (0,)), ((), ())),
        preferred_element_type=jnp.float32)                              # (N, TQ)

    # Softmax over keys (axis 0); normalization deferred and fused with gamma.
    m = jnp.max(e_t, axis=0, keepdims=True)                              # (1, TQ)
    p = jnp.exp((e_t - m).astype(exp_dtype))                             # (N, TQ)
    denom = jnp.sum(p, axis=0, keepdims=True, dtype=jnp.float32)         # (1, TQ)

    # o[c, i] = sum_j v[c, j] * p[j, i]   (contraction depth = N)
    o_un = jnp.dot(v_cache[...], p.astype(compute_dtype),
                   preferred_element_type=jnp.float32)                   # (C, TQ)

    inv_g = gamma_ref[0, 0] * pl.reciprocal(denom, approx=approx_recip)  # EUP
    out_ref[0] = o_un * inv_g + gb_ref[...] + x_q


def _choose_query_tile(N, collapse_max=1024, large_tile=512):
    """Query-tile length TQ (must divide N; multiple of 128 when tiling)."""
    if N % 128 != 0 or N <= collapse_max:
        # Small / non-lane-aligned maps: one step per batch element.
        # TODO(synk): for large N that is not a multiple of 128, pad the pixel
        # axis (with key masking) instead of this whole-N fallback.
        return N
    # 512 keeps the (N, TQ) score block inside v7x's 32 MiB scoped VMEM at
    # N ~ 4K; on v6e/v5e (128 MiB physical) TQ = 1024 is also reasonable.
    t = min(large_tile, N)
    t -= t % 128
    while N % t:
        t -= 128
    return t


def self_attention_forward(x_nchw, wq, bq, wk, bk, wv, bv, gamma, *,
                           matmul_dtype=jnp.bfloat16,
                           exp_dtype=jnp.float32,
                           approx_recip=True,
                           query_tile=None):
    """SelfAttention forward.

    x_nchw : (B, C, W, H) float32
    wq, wk : (C//8, C) 1x1-conv weights (torch layout: out, in); bq/bk: (C//8,)
    wv     : (C, C); bv: (C,)
    gamma  : (1,)
    """
    B, C, W, H = x_nchw.shape
    N = W * H

    tq = _choose_query_tile(N) if query_tile is None else query_tile
    assert N % tq == 0 and (tq == N or tq % 128 == 0), (N, tq)
    n_qt = N // tq

    hi = jax.lax.Precision.HIGHEST
    # Same flattening order as torch .view(B, C, W*H); no HBM transposes, and
    # the output tile is lane-dense (last dim TQ, a multiple of 128 or N).
    x_bcn = x_nchw.reshape(B, C, N).astype(jnp.float32)

    # Fused q/k projection:
    #   energy[i, j] = x_j^T (Wk^T Wq) x_i + (Wk^T bq) . x_j  (+ terms constant
    # along the softmax axis j, which drop out of softmax exactly).
    mt = jnp.einsum('dc,de->ce', wk, wq, precision=hi)                   # Wk^T Wq
    w_stack = jnp.concatenate([wv.astype(jnp.float32), mt],
                              axis=0).astype(matmul_dtype)               # (2C, C)
    u = jnp.einsum('dc,d->c', wk, bq, precision=hi).reshape(C, 1).astype(jnp.float32)
    # Value bias is invariant to softmax normalization -> add gamma*bv once
    # after the attention matmul instead of broadcasting bv over (C, N).
    gb = (gamma.reshape(()) * bv).reshape(C, 1).astype(jnp.float32)
    gamma_sc = gamma.reshape(1, 1).astype(jnp.float32)

    kernel = functools.partial(
        _self_attention_kernel, C=C, tq=tq, compute_dtype=matmul_dtype,
        exp_dtype=exp_dtype, approx_recip=approx_recip)

    out_bcn = pl.pallas_call(
        kernel,
        out_shape=jax.ShapeDtypeStruct((B, C, N), jnp.float32),
        grid_spec=pltpu.PrefetchScalarGridSpec(
            num_scalar_prefetch=0,
            grid=(B, n_qt),
            in_specs=[
                pl.BlockSpec((1, C, N), lambda b, q: (b, 0, 0)),    # x (k/v/residual)
                pl.BlockSpec((2 * C, C), lambda b, q: (0, 0)),      # [Wv ; Wk^T Wq]
                pl.BlockSpec((C, 1), lambda b, q: (0, 0)),          # Wk^T bq
                pl.BlockSpec((C, 1), lambda b, q: (0, 0)),          # gamma * bv
                pl.BlockSpec(memory_space=pltpu.MemorySpace.SMEM),  # gamma scalar
            ],
            out_specs=pl.BlockSpec((1, C, tq), lambda b, q: (b, 0, q)),
            scratch_shapes=[
                pltpu.VMEM((C, N), matmul_dtype),   # cached x (compute dtype)
                pltpu.VMEM((C, N), matmul_dtype),   # cached v = Wv.x
                pltpu.VMEM((C, N), matmul_dtype),   # cached s = (Wk^T Wq).x + u
            ],
        ),
        # Query axis must be "arbitrary": the per-batch scratch cache is filled
        # at q == 0 and reused by later q steps.  Batch stays "parallel"
        # (2 independent blocks at B=2 -> both v7x TensorCores busy).
        # TODO(synk): for B == 1 on v7x, disable the cache and mark q
        # "parallel" so the second TensorCore is not idle.
        compiler_params=pltpu.CompilerParams(
            dimension_semantics=("parallel", "arbitrary"),
            vmem_limit_bytes=32 * 1024 * 1024),
    )(x_bcn, w_stack, u, gb, gamma_sc)

    # TODO(synk): for very large feature maps (earliest limit: v7x's 64 MiB
    # VMEM around N ~ 8K at TQ=512) add a key/value reduction grid axis with
    # online softmax (flash-style) so per-step VMEM drops below the (N, TQ)
    # score block and v is never recomputed per query tile.
    return out_bcn.reshape(B, C, W, H)


def _reference_forward(x, wq, bq, wk, bk, wv, bv, gamma):
    """Pure-JAX mirror of the PyTorch forward (f32, highest matmul precision)."""
    B, C, W, H = x.shape
    N = W * H
    hi = jax.lax.Precision.HIGHEST
    xf = x.reshape(B, C, N).astype(jnp.float32)
    q = jnp.einsum('dc,bcn->bdn', wq, xf, precision=hi) + bq[None, :, None]
    k = jnp.einsum('dc,bcn->bdn', wk, xf, precision=hi) + bk[None, :, None]
    v = jnp.einsum('dc,bcn->bdn', wv, xf, precision=hi) + bv[None, :, None]
    energy = jnp.einsum('bdi,bdj->bij', q, k, precision=hi)       # (B, N, N)
    attn = jax.nn.softmax(energy, axis=-1)
    out = jnp.einsum('bcj,bij->bci', v, attn, precision=hi)       # (B, C, N)
    return gamma[0] * out.reshape(B, C, W, H) + x


def _xavier_uniform(key, out_ch, in_ch):
    # torch.nn.init.xavier_uniform_ for a 1x1 conv: fan_in=in_ch, fan_out=out_ch
    bound = (6.0 / (in_ch + out_ch)) ** 0.5
    return jax.random.uniform(key, (out_ch, in_ch), jnp.float32, -bound, bound)


if __name__ == "__main__":
    B, C, W, H = 2, 32, 16, 16       # in_dim=32 -> q/k project to 32 // 8 = 4
    C8 = C // 8

    key = jax.random.PRNGKey(0)
    kx, kq, kk, kv, kbq, kbk, kbv = jax.random.split(key, 7)

    x = jax.random.normal(kx, (B, C, W, H), jnp.float32)
    wq = _xavier_uniform(kq, C8, C)
    wk = _xavier_uniform(kk, C8, C)
    wv = _xavier_uniform(kv, C, C)
    # The module initializes biases and gamma to zero; use nonzero values here
    # so the bias-fusion and residual-scale paths are actually exercised.
    bq = 0.1 * jax.random.normal(kbq, (C8,), jnp.float32)
    bk = 0.1 * jax.random.normal(kbk, (C8,), jnp.float32)
    bv = 0.1 * jax.random.normal(kbv, (C,), jnp.float32)
    gamma = jnp.array([0.8], jnp.float32)

    ref = _reference_forward(x, wq, bq, wk, bk, wv, bv, gamma)

    # 1) Exact path, collapsed grid (N=256 -> grid=(B, 1), one step per batch).
    out_exact = jax.block_until_ready(
        self_attention_forward(x, wq, bq, wk, bk, wv, bv, gamma,
                               matmul_dtype=jnp.float32, approx_recip=False))
    assert out_exact.shape == (B, C, W, H)
    assert jnp.allclose(out_exact, ref, atol=5e-3, rtol=5e-3)

    # 2) Exact path with forced query tiling: exercises the per-batch scratch
    #    cache (pl.when(q==0)) and the aligned per-tile slicing used for large
    #    feature maps.
    out_tiled = jax.block_until_ready(
        self_attention_forward(x, wq, bq, wk, bk, wv, bv, gamma,
                               matmul_dtype=jnp.float32, approx_recip=False,
                               query_tile=128))
    assert jnp.allclose(out_tiled, ref, atol=5e-3, rtol=5e-3)

    # 3) Fast path (default): bf16 MXU operands with f32 accumulation + EUP
    #    reciprocal.  Looser sanity tolerance for bf16 rounding.
    out_fast = jax.block_until_ready(
        self_attention_forward(x, wq, bq, wk, bk, wv, bv, gamma))
    assert out_fast.shape == (B, C, W, H)
    assert jnp.allclose(out_fast, ref, atol=1e-1, rtol=1e-1)

    print("KERNEL_OK")
</pallas_src>

<mosaic_0001>
module attributes {stable_mosaic.version = 11 : i64} {
  func.func @_self_attention_kernel(%arg0: i32, %arg1: i32, %arg2: memref<1x32x256xf32, #tpu.memory_space<vmem>>, %arg3: memref<64x32xf32, #tpu.memory_space<vmem>>, %arg4: memref<32x1xf32, #tpu.memory_space<vmem>>, %arg5: memref<32x1xf32, #tpu.memory_space<vmem>>, %arg6: memref<1x1xf32, #tpu.memory_space<smem>>, %arg7: memref<1x32x256xf32, #tpu.memory_space<vmem>>, %arg8: memref<32x256xf32, #tpu.memory_space<vmem>>, %arg9: memref<32x256xf32, #tpu.memory_space<vmem>>, %arg10: memref<32x256xf32, #tpu.memory_space<vmem>>) attributes {dimension_semantics = [#tpu.dimension_semantics<parallel>, #tpu.dimension_semantics<arbitrary>], iteration_bounds = array<i64: 2, 1>, scalar_prefetch = 0 : i64, scratch_operands = 3 : i64, tpu.core_type = #tpu.core_type<tc>, window_params = [{transform_indices = @transform_0, window_bounds = array<i64: 1, 32, 256>}, {pipeline_mode = #tpu.pipeline_mode<synchronous>, transform_indices = @transform_1, window_bounds = array<i64: 64, 32>}, {pipeline_mode = #tpu.pipeline_mode<synchronous>, transform_indices = @transform_2, window_bounds = array<i64: 32, 1>}, {pipeline_mode = #tpu.pipeline_mode<synchronous>, transform_indices = @transform_3, window_bounds = array<i64: 32, 1>}, {transform_indices = @transform_4, window_bounds = array<i64: 1, 1>}, {transform_indices = @transform_5, window_bounds = array<i64: 1, 32, 256>}]} {
    %c0_i32 = arith.constant 0 : i32
    %0 = arith.cmpi eq, %arg1, %c0_i32 : i32
    %1 = arith.extui %0 : i1 to i32
    %c0_i32_0 = arith.constant 0 : i32
    %2 = arith.cmpi ne, %1, %c0_i32_0 : i32
    scf.if %2 {
      %c0_19 = arith.constant 0 : index
      %c0_20 = arith.constant 0 : index
      %c0_21 = arith.constant 0 : index
      %30 = vector.load %arg2[%c0_19, %c0_20, %c0_21] : memref<1x32x256xf32, #tpu.memory_space<vmem>>, vector<1x32x256xf32>
      %31 = vector.shape_cast %30 : vector<1x32x256xf32> to vector<32x256xf32>
      %c0_22 = arith.constant 0 : index
      %c0_23 = arith.constant 0 : index
      %32 = vector.load %arg8[%c0_22, %c0_23] : memref<32x256xf32, #tpu.memory_space<vmem>>, vector<32x256xf32>
      tpu.vector_store %arg8[%c0_22, %c0_23], %31 {strides = array<i32>} : memref<32x256xf32, #tpu.memory_space<vmem>>, vector<32x256xf32>,
      %c0_24 = arith.constant 0 : index
      %c0_25 = arith.constant 0 : index
      %33 = vector.load %arg3[%c0_24, %c0_25] : memref<64x32xf32, #tpu.memory_space<vmem>>, vector<64x32xf32>
      %cst_26 = arith.constant dense<0.000000e+00> : vector<64x256xf32>
      %34 = tpu.matmul %33, %31, %cst_26 {dimension_numbers = #tpu.dot_dimension_numbers<[1], [0], [0], [1], [0, 0, 1, 1], [], []>} : vector<64x32xf32>, vector<32x256xf32>, vector<64x256xf32> -> vector<64x256xf32>
      %35 = vector.extract_strided_slice %34 {offsets = [0, 0], sizes = [32, 256], strides = [1, 1]} : vector<64x256xf32> to vector<32x256xf32>
      %c0_27 = arith.constant 0 : index
      %c0_28 = arith.constant 0 : index
      %36 = vector.load %arg9[%c0_27, %c0_28] : memref<32x256xf32, #tpu.memory_space<vmem>>, vector<32x256xf32>
      tpu.vector_store %arg9[%c0_27, %c0_28], %35 {strides = array<i32>} : memref<32x256xf32, #tpu.memory_space<vmem>>, vector<32x256xf32>,
      %37 = vector.extract_strided_slice %34 {offsets = [32, 0], sizes = [32, 256], strides = [1, 1]} : vector<64x256xf32> to vector<32x256xf32>
      %c0_29 = arith.constant 0 : index
      %c0_30 = arith.constant 0 : index
      %38 = vector.load %arg4[%c0_29, %c0_30] : memref<32x1xf32, #tpu.memory_space<vmem>>, vector<32x1xf32>
      %39 = vector.broadcast %38 : vector<32x1xf32> to vector<32x256xf32>
      %40 = arith.addf %37, %39 : vector<32x256xf32>
      %c0_31 = arith.constant 0 : index
      %c0_32 = arith.constant 0 : index
      %41 = vector.load %arg10[%c0_31, %c0_32] : memref<32x256xf32, #tpu.memory_space<vmem>>, vector<32x256xf32>
      tpu.vector_store %arg10[%c0_31, %c0_32], %40 {strides = array<i32>} : memref<32x256xf32, #tpu.memory_space<vmem>>, vector<32x256xf32>,
    } else {
    }
    %c0 = arith.constant 0 : index
    %c0_1 = arith.constant 0 : index
    %3 = vector.load %arg10[%c0, %c0_1] : memref<32x256xf32, #tpu.memory_space<vmem>>, vector<32x256xf32>
    %c0_2 = arith.constant 0 : index
    %c0_3 = arith.constant 0 : index
    %c0_4 = arith.constant 0 : index
    %4 = vector.load %arg2[%c0_2, %c0_3, %c0_4] : memref<1x32x256xf32, #tpu.memory_space<vmem>>, vector<1x32x256xf32>
    %5 = vector.shape_cast %4 : vector<1x32x256xf32> to vector<32x256xf32>
    %c0_5 = arith.constant 0 : index
    %c0_6 = arith.constant 0 : index
    %6 = vector.load %arg8[%c0_5, %c0_6] : memref<32x256xf32, #tpu.memory_space<vmem>>, vector<32x256xf32>
    %cst = arith.constant dense<0.000000e+00> : vector<256x256xf32>
    %7 = tpu.matmul %6, %3, %cst {dimension_numbers = #tpu.dot_dimension_numbers<[0], [0], [1], [1], [0, 1, 1, 1], [], []>} : vector<32x256xf32>, vector<32x256xf32>, vector<256x256xf32> -> vector<256x256xf32>
    %cst_7 = arith.constant dense<0xFF800000> : vector<256xf32>
    %8 = vector.multi_reduction <maximumf>, %7, %cst_7 [0] : vector<256x256xf32> to vector<256xf32>
    %9 = vector.shape_cast %8 : vector<256xf32> to vector<1x256xf32>
    %10 = vector.broadcast %9 : vector<1x256xf32> to vector<256x256xf32>
    %11 = arith.subf %7, %10 : vector<256x256xf32>
    %12 = math.exp %11 : vector<256x256xf32>
    %cst_8 = arith.constant dense<0.000000e+00> : vector<256xf32>
    %13 = vector.multi_reduction <add>, %12, %cst_8 [0] : vector<256x256xf32> to vector<256xf32>
    %14 = vector.shape_cast %13 : vector<256xf32> to vector<1x256xf32>
    %c0_9 = arith.constant 0 : index
    %c0_10 = arith.constant 0 : index
    %15 = vector.load %arg9[%c0_9, %c0_10] : memref<32x256xf32, #tpu.memory_space<vmem>>, vector<32x256xf32>
    %cst_11 = arith.constant dense<0.000000e+00> : vector<32x256xf32>
    %16 = tpu.matmul %15, %12, %cst_11 {dimension_numbers = #tpu.dot_dimension_numbers<[1], [0], [0], [1], [0, 0, 1, 1], [], []>} : vector<32x256xf32>, vector<256x256xf32>, vector<32x256xf32> -> vector<32x256xf32>
    %c0_12 = arith.constant 0 : index
    %c0_13 = arith.constant 0 : index
    %17 = memref.load %arg6[%c0_12, %c0_13] : memref<1x1xf32, #tpu.memory_space<smem>>
    %18 = tpu.reciprocal %14 : vector<1x256xf32> -> vector<1x256xf32>
    %19 = vector.broadcast %17 : f32 to vector<1x256xf32>
    %20 = arith.mulf %19, %18 : vector<1x256xf32>
    %21 = vector.broadcast %20 : vector<1x256xf32> to vector<32x256xf32>
    %22 = arith.mulf %16, %21 : vector<32x256xf32>
    %c0_14 = arith.constant 0 : index
    %c0_15 = arith.constant 0 : index
    %23 = vector.load %arg5[%c0_14, %c0_15] : memref<32x1xf32, #tpu.memory_space<vmem>>, vector<32x1xf32>
    %24 = vector.broadcast %23 : vector<32x1xf32> to vector<32x256xf32>
    %25 = arith.addf %22, %24 : vector<32x256xf32>
    %26 = arith.addf %25, %5 : vector<32x256xf32>
    %c0_16 = arith.constant 0 : index
    %c0_17 = arith.constant 0 : index
    %c0_18 = arith.constant 0 : index
    %27 = vector.load %arg7[%c0_16, %c0_17, %c0_18] : memref<1x32x256xf32, #tpu.memory_space<vmem>>, vector<1x32x256xf32>
    %28 = vector.shape_cast %27 : vector<1x32x256xf32> to vector<32x256xf32>
    %29 = vector.shape_cast %26 : vector<32x256xf32> to vector<1x32x256xf32>
    tpu.vector_store %arg7[%c0_16, %c0_17, %c0_18], %29 {strides = array<i32>} : memref<1x32x256xf32, #tpu.memory_space<vmem>>, vector<1x32x256xf32>,
    return
  }
  func.func @transform_0(%arg0: i32, %arg1: i32) -> (i32, i32, i32) {
    %c0_i32 = arith.constant 0 : i32
    %c0_i32_0 = arith.constant 0 : i32
    %c0_i32_1 = arith.constant 0 : i32
    return %arg0, %c0_i32, %c0_i32_0 : i32, i32, i32
  }
  func.func @transform_1(%arg0: i32, %arg1: i32) -> (i32, i32) {
    %c0_i32 = arith.constant 0 : i32
    %c0_i32_0 = arith.constant 0 : i32
    %c0_i32_1 = arith.constant 0 : i32
    return %c0_i32, %c0_i32_0 : i32, i32
  }
  func.func @transform_2(%arg0: i32, %arg1: i32) -> (i32, i32) {
    %c0_i32 = arith.constant 0 : i32
    %c0_i32_0 = arith.constant 0 : i32
    %c0_i32_1 = arith.constant 0 : i32
    return %c0_i32, %c0_i32_0 : i32, i32
  }
  func.func @transform_3(%arg0: i32, %arg1: i32) -> (i32, i32) {
    %c0_i32 = arith.constant 0 : i32
    %c0_i32_0 = arith.constant 0 : i32
    %c0_i32_1 = arith.constant 0 : i32
    return %c0_i32, %c0_i32_0 : i32, i32
  }
  func.func @transform_4(%arg0: i32, %arg1: i32) -> (i32, i32) {
    %c0_i32 = arith.constant 0 : i32
    %c0_i32_0 = arith.constant 0 : i32
    %c0_i32_1 = arith.constant 0 : i32
    return %c0_i32, %c0_i32_0 : i32, i32
  }
  func.func @transform_5(%arg0: i32, %arg1: i32) -> (i32, i32, i32) {
    %c0_i32 = arith.constant 0 : i32
    %c0_i32_0 = arith.constant 0 : i32
    return %arg0, %c0_i32, %arg1 : i32, i32, i32
  }
}

</mosaic_0001>

<llo_original>
// kernel: tpu_custom_call.1
$region0: #{tpu_custom_call.1}
  #allocation0 [shape = 'u32[]', space=smem, size = 0x4, offset = 0x4, fixed_abs, tag = 'smem constant byte address 0x4 - core index']
  #allocation1 [shape = 'u32[144,128]{1,0:T(1,128)}', space=vmem, size = 0x12000, scoped, tag = 'internal scratch']
  #allocation2 [shape = 'f32[32,256]{1,0:T(8,128)}', space=vmem, size = 0x8000, scoped, tag = 'scratch operand']
  #allocation3 [shape = 'f32[32,256]{1,0:T(8,128)}', space=vmem, size = 0x8000, scoped, tag = 'scratch operand']
  #allocation4 [shape = 'f32[32,256]{1,0:T(8,128)}', space=vmem, size = 0x8000, scoped, tag = 'scratch operand']
  #allocation5 [shape = 'f32[1,1]{1,0:T(1,128)S(6)}', space=smem, size = 0x200, scoped, tag = 'scoped memory for tpu_custom_call.1']
  %s0 = inlined_call_operand.vmem [shape: f32[2,32,256], index: 0, kind: input, shape index: {}]
  %s1 = inlined_call_operand.vmem [shape: f32[64,32], index: 1, kind: input, shape index: {}]
  %s2 = inlined_call_operand.vmem [shape: f32[32,1], index: 2, kind: input, shape index: {}]
  %s3 = inlined_call_operand.vmem [shape: f32[32,1], index: 3, kind: input, shape index: {}]
  %s4 = inlined_call_operand.<no memory space> [shape: f32[1,1], index: 4, kind: input, shape index: {}]
  %s5 = inlined_call_operand.hbm [shape: f32[2,32,256], index: 5, kind: output, shape index: {}]
  %s6 = sld [smem:[#allocation0]]
  $region57: #{tpu_custom_call.1} parent=0
    _
  %s8 = ssub.s32 1, %s6
  %s9 = scalar_select 0, %s8, %s6
  %10 = sst [smem:[#allocation5]] %s4
  $region1: #{tpu_custom_call.1} parent=0
    #allocation6 [shape = 'u8[65536]{0}', space=vmem, size = 0x10000, scoped, tag = 'output window, operand 0']
    #allocation7 [shape = 's32[2]{0}', space=sflag, size = 0x8, scoped, tag = 'scoped memory for tpu_custom_call.1']
    %11 = vsyncpa [#allocation7], 0
    %s12 = scalar_lea.sflag [#allocation7], 1
    %13 = vsyncpa %s12, 0
    loop: start=0, step=1, limit=4
    $region2: #{tpu_custom_call.1} parent=1 // loop_pre_header
      _
    $region3: #{tpu_custom_call.1} parent=1 // loop_header
      %s15 = sphi 0, %s19
      %p16 = scmp.ge.s32.totalorder %s15, 4
      %s22 = sphi 0, %s34
      %s23 = sphi 0, %s30
      %s24 = sphi 0, %s22
      %s25 = sphi 0, %s23
      %s26 = sphi 0, %s24
      %s27 = sphi 0, %s25
      %s37 = sphi 0, %s39
      %s40 = sphi 0, %s37
      %s41 = sphi 0, %s40
      %s57 = sphi 0, %s41
      %s61 = sphi 0, %s61
      %s63 = sphi 0, %s61
      %s64 = sphi 0, %s63
      %s78 = sphi 0, %s64
      %s82 = sphi 0, %s82
      %s84 = sphi 0, %s82
      %s85 = sphi 0, %s84
      %s99 = sphi 0, %s85
      %s103 = sphi 0, %s103
      %s105 = sphi 0, %s103
      %s106 = sphi 0, %s105
      %s120 = sphi 0, %s106
      %s124 = sphi 0, %s124
      %s126 = sphi 0, %s124
      %s127 = sphi 0, %s126
      %s141 = sphi 0, %s127
      %s149 = sphi 0, %s151
      %s152 = sphi 0, %s149
      %s153 = sphi 0, %s152
      %s169 = sphi 0, %s153
    $region4: #{tpu_custom_call.1} parent=1 // loop_header_branch
      %18 = sbr.rel (%p16) target = $region8
    $region5: #{tpu_custom_call.1} parent=1 // loop_body
      %s20 = ssub.s32 %s15, 1
      %s21 = ssub.s32 %s15, 2
      %s28 = sadd.s32 1, %s23
      %p29 = scmp.ge.s32.totalorder %s28, 1
      %s30 = scalar_select %p29, 0, %s28
      %s31 = sadd.s32 1, %s22
      %s32 = scalar_select %p29, %s31, %s22
      %p33 = scmp.ge.s32.totalorder %s32, 2
      %s34 = scalar_select %p33, 0, %s32
      %s35 = ssub.s32 %s22, %s34
      %p36 = scmp.eq.s32.totalorder %s35, 0
      %s38 = sadd.s32 %s37, 1
      %s39 = scalar_select %p36, %s37, %s38
      %p42 = pneg %p36
      %p43 = scmp.eq.s32.totalorder %s15, 1
      %p44 = por %p42, %p43
      %p45 = scmp.ne.s32.totalorder %s37, %s40
      %p46 = scmp.eq.s32.totalorder %s15, 0
      %p47 = por %p45, %p46
      %p48 = scmp.ne.s32.totalorder %s37, %s40
      %p49 = scmp.eq.s32.totalorder %s20, 1
      %p50 = por %p48, %p49
      %p51 = scmp.ne.s32.totalorder %s40, %s41
      %p52 = scmp.eq.s32.totalorder %s20, 0
      %p53 = por %p51, %p52
      %p54 = scmp.ne.s32.totalorder %s40, %s41
      %p55 = scmp.eq.s32.totalorder %s21, 1
      %p56 = por %p54, %p55
      %p58 = scmp.ne.s32.totalorder %s41, %s57
      %p59 = scmp.eq.s32.totalorder %s21, 0
      %p60 = por %p58, %p59
      %s62 = sadd.s32 %s61, 1
      %p65 = scmp.eq.s32.totalorder %s15, 1
      %p66 = scmp.ne.s32.totalorder %s61, %s63
      %p67 = scmp.eq.s32.totalorder %s15, 0
      %p68 = por %p66, %p67
      %p69 = scmp.ne.s32.totalorder %s61, %s63
      %p70 = scmp.eq.s32.totalorder %s20, 1
      %p71 = por %p69, %p70
      %p72 = scmp.ne.s32.totalorder %s63, %s64
      %p73 = scmp.eq.s32.totalorder %s20, 0
      %p74 = por %p72, %p73
      %p75 = scmp.ne.s32.totalorder %s63, %s64
      %p76 = scmp.eq.s32.totalorder %s21, 1
      %p77 = por %p75, %p76
      %p79 = scmp.ne.s32.totalorder %s64, %s78
      %p80 = scmp.eq.s32.totalorder %s21, 0
      %p81 = por %p79, %p80
      %s83 = sadd.s32 %s82, 1
      %p86 = scmp.eq.s32.totalorder %s15, 1
      %p87 = scmp.ne.s32.totalorder %s82, %s84
      %p88 = scmp.eq.s32.totalorder %s15, 0
      %p89 = por %p87, %p88
      %p90 = scmp.ne.s32.totalorder %s82, %s84
      %p91 = scmp.eq.s32.totalorder %s20, 1
      %p92 = por %p90, %p91
      %p93 = scmp.ne.s32.totalorder %s84, %s85
      %p94 = scmp.eq.s32.totalorder %s20, 0
      %p95 = por %p93, %p94
      %p96 = scmp.ne.s32.totalorder %s84, %s85
      %p97 = scmp.eq.s32.totalorder %s21, 1
      %p98 = por %p96, %p97
      %p100 = scmp.ne.s32.totalorder %s85, %s99
      %p101 = scmp.eq.s32.totalorder %s21, 0
      %p102 = por %p100, %p101
      %s104 = sadd.s32 %s103, 1
      %p107 = scmp.eq.s32.totalorder %s15, 1
      %p108 = scmp.ne.s32.totalorder %s103, %s105
      %p109 = scmp.eq.s32.totalorder %s15, 0
      %p110 = por %p108, %p109
      %p111 = scmp.ne.s32.totalorder %s103, %s105
      %p112 = scmp.eq.s32.totalorder %s20, 1
      %p113 = por %p111, %p112
      %p114 = scmp.ne.s32.totalorder %s105, %s106
      %p115 = scmp.eq.s32.totalorder %s20, 0
      %p116 = por %p114, %p115
      %p117 = scmp.ne.s32.totalorder %s105, %s106
      %p118 = scmp.eq.s32.totalorder %s21, 1
      %p119 = por %p117, %p118
      %p121 = scmp.ne.s32.totalorder %s106, %s120
      %p122 = scmp.eq.s32.totalorder %s21, 0
      %p123 = por %p121, %p122
      %s125 = sadd.s32 %s124, 1
      %p128 = scmp.eq.s32.totalorder %s15, 1
      %p129 = scmp.ne.s32.totalorder %s124, %s126
      %p130 = scmp.eq.s32.totalorder %s15, 0
      %p131 = por %p129, %p130
      %p132 = scmp.ne.s32.totalorder %s124, %s126
      %p133 = scmp.eq.s32.totalorder %s20, 1
      %p134 = por %p132, %p133
      %p135 = scmp.ne.s32.totalorder %s126, %s127
      %p136 = scmp.eq.s32.totalorder %s20, 0
      %p137 = por %p135, %p136
      %p138 = scmp.ne.s32.totalorder %s126, %s127
      %p139 = scmp.eq.s32.totalorder %s21, 1
      %p140 = por %p138, %p139
      %p142 = scmp.ne.s32.totalorder %s127, %s141
      %p143 = scmp.eq.s32.totalorder %s21, 0
      %p144 = por %p142, %p143
      %s145 = ssub.s32 %s22, %s34
      %s146 = ssub.s32 %s23, %s30
      %s147 = sor.u32 %s145, %s146
      %p148 = scmp.eq.s32.totalorder %s147, 0
      %s150 = sadd.s32 %s149, 1
      %s151 = scalar_select %p148, %s149, %s150
      %p154 = pneg %p148
      %p155 = scmp.eq.s32.totalorder %s15, 1
      %p156 = por %p154, %p155
      %p157 = scmp.ne.s32.totalorder %s149, %s152
      %p158 = scmp.eq.s32.totalorder %s15, 0
      %p159 = por %p157, %p158
      %p160 = scmp.ne.s32.totalorder %s149, %s152
      %p161 = scmp.eq.s32.totalorder %s20, 1
      %p162 = por %p160, %p161
      %p163 = scmp.ne.s32.totalorder %s152, %s153
      %p164 = scmp.eq.s32.totalorder %s20, 0
      %p165 = por %p163, %p164
      %p166 = scmp.ne.s32.totalorder %s152, %s153
      %p167 = scmp.eq.s32.totalorder %s21, 1
      %p168 = por %p166, %p167
      %p170 = scmp.ne.s32.totalorder %s153, %s169
      %p171 = scmp.eq.s32.totalorder %s21, 0
      %p172 = por %p170, %p171
      %p173 = scmp.le.s32.totalorder 1, %s15
      %p174 = scmp.lt.s32.totalorder %s15, 3
      %p175 = pnand %p173, %p174
      %p176 = pneg %p175
      // Predicated region
      $region9: #{tpu_custom_call.1} parent=5 // pred_check
        _
      $region10: #{tpu_custom_call.1} parent=5 // pred_check_branch
        %178 = sbr.rel (%p175) target = $region12
      $region11: #{tpu_custom_call.1} parent=5 // pred_region
        %s179 = ssub.s32 %s15, 1
        // Predicated region
        $region13: #{tpu_custom_call.1} parent=11 // pred_check
          %p180 = pneg %p74
        $region14: #{tpu_custom_call.1} parent=11 // pred_check_branch
          %182 = sbr.rel (%p180) target = $region16
        $region15: #{tpu_custom_call.1} parent=11 // pred_region
          _
        $region16: #{tpu_custom_call.1} parent=11 // pred_fallthru
          _
        // Predicated region
        $region17: #{tpu_custom_call.1} parent=11 // pred_check
          %p183 = pneg %p95
        $region18: #{tpu_custom_call.1} parent=11 // pred_check_branch
          %185 = sbr.rel (%p183) target = $region20
        $region19: #{tpu_custom_call.1} parent=11 // pred_region
          _
        $region20: #{tpu_custom_call.1} parent=11 // pred_fallthru
          _
        // Predicated region
        $region21: #{tpu_custom_call.1} parent=11 // pred_check
          %p186 = pneg %p116
        $region22: #{tpu_custom_call.1} parent=11 // pred_check_branch
          %188 = sbr.rel (%p186) target = $region24
        $region23: #{tpu_custom_call.1} parent=11 // pred_region
          _
        $region24: #{tpu_custom_call.1} parent=11 // pred_fallthru
          _
        // Predicated region
        $region25: #{tpu_custom_call.1} parent=11 // pred_check
          %p189 = pneg %p137
        $region26: #{tpu_custom_call.1} parent=11 // pred_check_branch
          %191 = sbr.rel (%p189) target = $region28
        $region27: #{tpu_custom_call.1} parent=11 // pred_region
          _
        $region28: #{tpu_custom_call.1} parent=11 // pred_fallthru
          _
      $region12: #{tpu_custom_call.1} parent=5 // pred_fallthru
        _
      %p192 = scmp.lt.s32.totalorder %s15, 2
      // Predicated region
      $region29: #{tpu_custom_call.1} parent=5 // pred_check
        %p193 = pneg %p192
      $region30: #{tpu_custom_call.1} parent=5 // pred_check_branch
        %195 = sbr.rel (%p193) target = $region32
      $region31: #{tpu_custom_call.1} parent=5 // pred_region
        // Predicated region
        $region33: #{tpu_custom_call.1} parent=31 // pred_check
          %p196 = pneg %p47
        $region34: #{tpu_custom_call.1} parent=31 // pred_check_branch
          %198 = sbr.rel (%p196) target = $region36
        $region35: #{tpu_custom_call.1} parent=31 // pred_region
          %p199 = scmp.lt.s32.totalorder %s22, 1
          %s200 = scalar_select %p199, %s22, 1
          %s201 = smul.addr %s200, 8
          %s202 = smul.addr %s201, 8
          %s203 = scalar_lea.vmem %s0, %s202
        $region36: #{tpu_custom_call.1} parent=31 // pred_fallthru
          _
      $region32: #{tpu_custom_call.1} parent=5 // pred_fallthru
        _
      %p204 = scmp.le.s32.totalorder 1, %s15
      %p205 = scmp.lt.s32.totalorder %s15, 3
      %p206 = pnand %p204, %p205
      %p207 = pneg %p206
      // Predicated region
      $region37: #{tpu_custom_call.1} parent=5 // pred_check
        _
      $region38: #{tpu_custom_call.1} parent=5 // pred_check_branch
        %209 = sbr.rel (%p206) target = $region40
      $region39: #{tpu_custom_call.1} parent=5 // pred_region
        %s210 = ssub.s32 %s15, 1
        %p211 = scmp.lt.s32.totalorder %s24, 1
        %s212 = scalar_select %p211, %s24, 1
        %s213 = smul.addr %s212, 8
        %s214 = smul.addr %s213, 8
        %s215 = scalar_lea.vmem %s0, %s214
        %p216 = pneg %p53
        %p217 = pneg %p50
        %p218 = pneg %p74
        %p219 = pneg %p71
        %p220 = pneg %p95
        %p221 = pneg %p92
        %p222 = pneg %p116
        %p223 = pneg %p113
        %p224 = pneg %p137
        %p225 = pneg %p134
        %p226 = pneg %p165
        %p227 = pneg %p162
        %s228 = sand.u32 %s152, 1
        %s229 = scalar_lea.sflag [#allocation7], %s228
        %s230 = sand.u32 %s152, 1
        %s231 = smul.addr %s230, 64
        %s232 = scalar_lea.vmem [#allocation6], %s231
        %p233 = scmp.lt.s32.totalorder %s24, 1
        %s234 = scalar_select %p233, %s24, 1
        %s235 = smul.addr %s234, 8
        %s236 = smul.addr %s235, 8
        %s237 = scalar_lea.vmem %s0, %s236
        %s238 = smul.u32 2, %s25
        %p239 = scmp.eq.s32.totalorder %s25, 0
        // Predicated region
        $region41: #{tpu_custom_call.1} parent=39 // pred_check
          %p240 = pneg %p239
        $region42: #{tpu_custom_call.1} parent=39 // pred_check_branch
          %242 = sbr.rel (%p240) target = $region44
        $region43: #{tpu_custom_call.1} parent=39 // pred_region
          %v243 = vld [vmem:[%s237] sm:$0xff]
          %v244 = vld [vmem:[%s237 + $0x8] sm:$0xff]
          %v245 = vld [vmem:[%s237 + $0x10] sm:$0xff]
          %v246 = vld [vmem:[%s237 + $0x18] sm:$0xff]
          %v247 = vld [vmem:[%s237 + $0x20] sm:$0xff]
          %v248 = vld [vmem:[%s237 + $0x28] sm:$0xff]
          %v249 = vld [vmem:[%s237 + $0x30] sm:$0xff]
          %v250 = vld [vmem:[%s237 + $0x38] sm:$0xff]
          %251 = vst [vmem:[#allocation2] sm:$0xff] %v243
          %252 = vst [vmem:[#allocation2 + $0x8] sm:$0xff] %v244
          %253 = vst [vmem:[#allocation2 + $0x10] sm:$0xff] %v245
          %254 = vst [vmem:[#allocation2 + $0x18] sm:$0xff] %v246
          %255 = vst [vmem:[#allocation2 + $0x20] sm:$0xff] %v247
          %256 = vst [vmem:[#allocation2 + $0x28] sm:$0xff] %v248
          %257 = vst [vmem:[#allocation2 + $0x30] sm:$0xff] %v249
          %258 = vst [vmem:[#allocation2 + $0x38] sm:$0xff] %v250
          %v259 = vld [vmem:[%s1] sm:$0xff]
          %v260 = vld [vmem:[%s1 + $0x8] sm:$0xff]
          %v261 = vld [vmem:[%s1 + $0x10] sm:$0xff]
          %v262 = vld [vmem:[%s1 + $0x18] sm:$0xff]
          %v263 = vld [vmem:[%s1 + $0x20] sm:$0xff]
          %v264 = vld [vmem:[%s1 + $0x28] sm:$0xff]
          %v265 = vld [vmem:[%s1 + $0x30] sm:$0xff]
          %v266 = vld [vmem:[%s1 + $0x38] sm:$0xff]
          %vm267 = vcmask 261120
          %v269 = vsel %vm267, %v259, 0
          %v272 = vsel %vm267, %v260, 0
          %v275 = vsel %vm267, %v261, 0
          %v278 = vsel %vm267, %v262, 0
          %v281 = vsel %vm267, %v263, 0
          %v284 = vsel %vm267, %v264, 0
          %v287 = vsel %vm267, %v265, 0
          %v290 = vsel %vm267, %v266, 0
          %292 = vmatprep.subr.mxu0 %v244
          %293 = vmatpush1.msra.mxu0 %v243
          %294 = vmatprep.subr.mxu0 %v246
          %295 = vmatpush1.msra.mxu0 %v245
          %296 = vmatprep.subr.mxu0 %v248
          %297 = vmatpush1.msra.mxu0 %v247
          %298 = vmatprep.subr.mxu0 %v250
          %299 = vmatpush1.msra.mxu0 %v249
          %300 = vmatprep.subr.mxu0 0.0
          %301 = vmatpush1.msra.mxu0 0.0
          %302 = vmatprep.subr.mxu0 0.0
          %303 = vmatpush1.msra.mxu0 0.0
          %304 = vmatprep.subr.mxu0 0.0
          %305 = vmatpush1.msra.mxu0 0.0
          %306 = vmatprep.subr.mxu0 0.0
          %307 = vmatpush1.msra.mxu0 0.0
          %308 = vmatprep.subr.mxu0 0.0
          %309 = vmatpush1.msra.mxu0 0.0
          %310 = vmatprep.subr.mxu0 0.0
          %311 = vmatpush1.msra.mxu0 0.0
          %312 = vmatprep.subr.mxu0 0.0
          %313 = vmatpush1.msra.mxu0 0.0
          %314 = vmatprep.subr.mxu0 0.0
          %315 = vmatpush1.msra.mxu0 0.0
          %316 = vmatprep.subr.mxu0 0.0
          %317 = vmatpush1.msra.mxu0 0.0
          %318 = vmatprep.subr.mxu0 0.0
          %319 = vmatpush1.msra.mxu0 0.0
          %320 = vmatprep.subr.mxu0 0.0
          %321 = vmatpush1.msra.mxu0 0.0
          %322 = vmatprep.subr.mxu0 0.0
          %323 = vmatpush1.msra.mxu0 0.0
          %324 = vmatprep.subr.mxu0 0.0
          %325 = vmatpush1.msra.mxu0 0.0
          %326 = vmatprep.subr.mxu0 0.0
          %327 = vmatpush1.msra.mxu0 0.0
          %328 = vmatprep.subr.mxu0 0.0
          %329 = vmatpush1.msra.mxu0 0.0
          %330 = vmatprep.subr.mxu0 0.0
          %331 = vmatpush1.msra.mxu0 0.0
          %332 = vmatprep.subr.mxu0 0.0
          %333 = vmatpush1.msra.mxu0 0.0
          %334 = vmatprep.subr.mxu0 0.0
          %335 = vmatpush1.msra.mxu0 0.0
          %336 = vmatprep.subr.mxu0 0.0
          %337 = vmatpush1.msra.mxu0 0.0
          %338 = vmatprep.subr.mxu0 0.0
          %339 = vmatpush1.msra.mxu0 0.0
          %340 = vmatprep.subr.mxu0 0.0
          %341 = vmatpush1.msra.mxu0 0.0
          %342 = vmatprep.subr.mxu0 0.0
          %343 = vmatpush1.msra.mxu0 0.0
          %344 = vmatprep.subr.mxu0 0.0
          %345 = vmatpush1.msra.mxu0 0.0
          %346 = vmatprep.subr.mxu0 0.0
          %347 = vmatpush1.msra.mxu0 0.0
          %348 = vmatprep.subr.mxu0 0.0
          %349 = vmatpush1.msra.mxu0 0.0
          %350 = vmatprep.subr.mxu0 0.0
          %351 = vmatpush1.msra.mxu0 0.0
          %352 = vmatprep.subr.mxu0 0.0
          %353 = vmatpush1.msra.mxu0 0.0
          %354 = vmatprep.subr.mxu0 0.0
          %355 = vmatpush1.msra.mxu0 0.0
          %356 = vmatprep.mubr.f32.mxu0 0.0
          %357 = vmatmul.mubr.f32.gmra.mrb[0].mxu0 %v269
          %v358 = vpop.f32.mrb[0].mxu0
          %v359 = vadd.f32 0.0, %v358
          %v360 = vpop.f32.mrb[0].mxu0
          %v361 = vadd.f32 0.0, %v360
          %362 = vmatprep.mubr.f32.mxu0 0.0
          %363 = vmatmul.mubr.f32.gmra.mrb[0].mxu0 %v272
          %v364 = vpop.f32.mrb[0].mxu0
          %v365 = vadd.f32 0.0, %v364
          %v366 = vpop.f32.mrb[0].mxu0
          %v367 = vadd.f32 0.0, %v366
          %368 = vmatprep.mubr.f32.mxu0 0.0
          %369 = vmatmul.mubr.f32.gmra.mrb[0].mxu0 %v275
          %v370 = vpop.f32.mrb[0].mxu0
          %v371 = vadd.f32 0.0, %v370
          %v372 = vpop.f32.mrb[0].mxu0
          %v373 = vadd.f32 0.0, %v372
          %374 = vmatprep.mubr.f32.mxu0 0.0
          %375 = vmatmul.mubr.f32.gmra.mrb[0].mxu0 %v278
          %v376 = vpop.f32.mrb[0].mxu0
          %v377 = vadd.f32 0.0, %v376
          %v378 = vpop.f32.mrb[0].mxu0
          %v379 = vadd.f32 0.0, %v378
          %380 = vmatprep.mubr.f32.mxu0 0.0
          %381 = vmatmul.mubr.f32.gmra.mrb[0].mxu0 %v281
          %v382 = vpop.f32.mrb[0].mxu0
          %v383 = vadd.f32 0.0, %v382
          %v384 = vpop.f32.mrb[0].mxu0
          %v385 = vadd.f32 0.0, %v384
          %386 = vmatprep.mubr.f32.mxu0 0.0
          %387 = vmatmul.mubr.f32.gmra.mrb[0].mxu0 %v284
          %v388 = vpop.f32.mrb[0].mxu0
          %v389 = vadd.f32 0.0, %v388
          %v390 = vpop.f32.mrb[0].mxu0
          %v391 = vadd.f32 0.0, %v390
          %392 = vmatprep.mubr.f32.mxu0 0.0
          %393 = vmatmul.mubr.f32.gmra.mrb[0].mxu0 %v287
          %v394 = vpop.f32.mrb[0].mxu0
          %v395 = vadd.f32 0.0, %v394
          %v396 = vpop.f32.mrb[0].mxu0
          %v397 = vadd.f32 0.0, %v396
          %398 = vmatprep.mubr.f32.mxu0 0.0
          %399 = vmatmul.mubr.f32.gmra.mrb[0].mxu0 %v290
          %v400 = vpop.f32.mrb[0].mxu0
          %v401 = vadd.f32 0.0, %v400
          %v402 = vpop.f32.mrb[0].mxu0
          %v403 = vadd.f32 0.0, %v402
          %404 = vdwg.mxu0
          %405 = vst [vmem:[#allocation3] sm:$0xff] %v359
          %406 = vst [vmem:[#allocation3 + $0x8] sm:$0xff] %v361
          %407 = vst [vmem:[#allocation3 + $0x10] sm:$0xff] %v365
          %408 = vst [vmem:[#allocation3 + $0x18] sm:$0xff] %v367
          %409 = vst [vmem:[#allocation3 + $0x20] sm:$0xff] %v371
          %410 = vst [vmem:[#allocation3 + $0x28] sm:$0xff] %v373
          %411 = vst [vmem:[#allocation3 + $0x30] sm:$0xff] %v377
          %412 = vst [vmem:[#allocation3 + $0x38] sm:$0xff] %v379
          %v413 = vld [vmem:[%s2] sm:$0xff]
          %v414 = vld [vmem:[%s2 + $0x8] sm:$0xff]
          %v415 = vld [vmem:[%s2 + $0x10] sm:$0xff]
          %v416 = vld [vmem:[%s2 + $0x18] sm:$0xff]
          %418 = vset.pattern.permute.xlu0 0
          %419 = vperm.xlu0 %418, %v413
          %v420 = vpop.permute.xlu0 %419
          %423 = vset.pattern.permute.xlu0 0
          %424 = vperm.xlu0 %423, %v414
          %v425 = vpop.permute.xlu0 %424
          %428 = vset.pattern.permute.xlu0 0
          %429 = vperm.xlu0 %428, %v415
          %v430 = vpop.permute.xlu0 %429
          %433 = vset.pattern.permute.xlu0 0
          %434 = vperm.xlu0 %433, %v416
          %v435 = vpop.permute.xlu0 %434
          %v437 = vadd.f32 %v383, %v420
          %v438 = vadd.f32 %v385, %v420
          %v439 = vadd.f32 %v389, %v425
          %v440 = vadd.f32 %v391, %v425
          %v441 = vadd.f32 %v395, %v430
          %v442 = vadd.f32 %v397, %v430
          %v443 = vadd.f32 %v401, %v435
          %v444 = vadd.f32 %v403, %v435
          %445 = vst [vmem:[#allocation4] sm:$0xff] %v437
          %446 = vst [vmem:[#allocation4 + $0x8] sm:$0xff] %v438
          %447 = vst [vmem:[#allocation4 + $0x10] sm:$0xff] %v439
          %448 = vst [vmem:[#allocation4 + $0x18] sm:$0xff] %v440
          %449 = vst [vmem:[#allocation4 + $0x20] sm:$0xff] %v441
          %450 = vst [vmem:[#allocation4 + $0x28] sm:$0xff] %v442
          %451 = vst [vmem:[#allocation4 + $0x30] sm:$0xff] %v443
          %452 = vst [vmem:[#allocation4 + $0x38] sm:$0xff] %v444
        $region44: #{tpu_custom_call.1} parent=39 // pred_fallthru
          _
        %v453 = vld [vmem:[#allocation4] sm:$0xff]
        %v454 = vld [vmem:[#allocation4 + $0x8] sm:$0xff]
        %v455 = vld [vmem:[#allocation4 + $0x10] sm:$0xff]
        %v456 = vld [vmem:[#allocation4 + $0x18] sm:$0xff]
        %v457 = vld [vmem:[#allocation4 + $0x20] sm:$0xff]
        %v458 = vld [vmem:[#allocation4 + $0x28] sm:$0xff]
        %v459 = vld [vmem:[#allocation4 + $0x30] sm:$0xff]
        %v460 = vld [vmem:[#allocation4 + $0x38] sm:$0xff]
        %v461 = vld [vmem:[%s237] sm:$0xff]
        %v462 = vld [vmem:[%s237 + $0x8] sm:$0xff]
        %v463 = vld [vmem:[%s237 + $0x10] sm:$0xff]
        %v464 = vld [vmem:[%s237 + $0x18] sm:$0xff]
        %v465 = vld [vmem:[%s237 + $0x20] sm:$0xff]
        %v466 = vld [vmem:[%s237 + $0x28] sm:$0xff]
        %v467 = vld [vmem:[%s237 + $0x30] sm:$0xff]
        %v468 = vld [vmem:[%s237 + $0x38] sm:$0xff]
        %v469 = vld [vmem:[#allocation2] sm:$0xff]
        %v470 = vld [vmem:[#allocation2 + $0x8] sm:$0xff]
        %v471 = vld [vmem:[#allocation2 + $0x10] sm:$0xff]
        %v472 = vld [vmem:[#allocation2 + $0x18] sm:$0xff]
        %v473 = vld [vmem:[#allocation2 + $0x20] sm:$0xff]
        %v474 = vld [vmem:[#allocation2 + $0x28] sm:$0xff]
        %v475 = vld [vmem:[#allocation2 + $0x30] sm:$0xff]
        %v476 = vld [vmem:[#allocation2 + $0x38] sm:$0xff]
        %477 = vxpose.xlu0.b32.start [1/16] %v469, 128
        %478 = vxpose.xlu0.b32.cont [2/16] %v471, 128
        %479 = vxpose.xlu0.b32.cont [3/16] %v473, 128
        %480 = vxpose.xlu0.b32.cont [4/16] %v475, 128
        %481 = vxpose.xlu0.b32.cont [5/16] 0.0, 128
        %482 = vxpose.xlu0.b32.cont [6/16] 0.0, 128
        %483 = vxpose.xlu0.b32.cont [7/16] 0.0, 128
        %484 = vxpose.xlu0.b32.cont [8/16] 0.0, 128
        %485 = vxpose.xlu0.b32.cont [9/16] 0.0, 128
        %486 = vxpose.xlu0.b32.cont [10/16] 0.0, 128
        %487 = vxpose.xlu0.b32.cont [11/16] 0.0, 128
        %488 = vxpose.xlu0.b32.cont [12/16] 0.0, 128
        %489 = vxpose.xlu0.b32.cont [13/16] 0.0, 128
        %490 = vxpose.xlu0.b32.cont [14/16] 0.0, 128
        %491 = vxpose.xlu0.b32.cont [15/16] 0.0, 128
        %492 = vxpose.xlu0.b32.end [16/16] 0.0, 128
        %v493 = vpop.trf.xlu0
        %v494 = vpop.trf.xlu0
        %v495 = vpop.trf.xlu0
        %v496 = vpop.trf.xlu0
        %v497 = vpop.trf.xlu0
        %v498 = vpop.trf.xlu0
        %v499 = vpop.trf.xlu0
        %v500 = vpop.trf.xlu0
        %v501 = vpop.trf.xlu0
        %v502 = vpop.trf.xlu0
        %v503 = vpop.trf.xlu0
        %v504 = vpop.trf.xlu0
        %v505 = vpop.trf.xlu0
        %v506 = vpop.trf.xlu0
        %v507 = vpop.trf.xlu0
        %v508 = vpop.trf.xlu0
        %509 = vxpose.xlu0.b32.start [1/16] %v470, 128
        %510 = vxpose.xlu0.b32.cont [2/16] %v472, 128
        %511 = vxpose.xlu0.b32.cont [3/16] %v474, 128
        %512 = vxpose.xlu0.b32.cont [4/16] %v476, 128
        %513 = vxpose.xlu0.b32.cont [5/16] 0.0, 128
        %514 = vxpose.xlu0.b32.cont [6/16] 0.0, 128
        %515 = vxpose.xlu0.b32.cont [7/16] 0.0, 128
        %516 = vxpose.xlu0.b32.cont [8/16] 0.0, 128
        %517 = vxpose.xlu0.b32.cont [9/16] 0.0, 128
        %518 = vxpose.xlu0.b32.cont [10/16] 0.0, 128
        %519 = vxpose.xlu0.b32.cont [11/16] 0.0, 128
        %520 = vxpose.xlu0.b32.cont [12/16] 0.0, 128
        %521 = vxpose.xlu0.b32.cont [13/16] 0.0, 128
        %522 = vxpose.xlu0.b32.cont [14/16] 0.0, 128
        %523 = vxpose.xlu0.b32.cont [15/16] 0.0, 128
        %524 = vxpose.xlu0.b32.end [16/16] 0.0, 128
        %v525 = vpop.trf.xlu0
        %v526 = vpop.trf.xlu0
        %v527 = vpop.trf.xlu0
        %v528 = vpop.trf.xlu0
        %v529 = vpop.trf.xlu0
        %v530 = vpop.trf.xlu0
        %v531 = vpop.trf.xlu0
        %v532 = vpop.trf.xlu0
        %v533 = vpop.trf.xlu0
        %v534 = vpop.trf.xlu0
        %v535 = vpop.trf.xlu0
        %v536 = vpop.trf.xlu0
        %v537 = vpop.trf.xlu0
        %v538 = vpop.trf.xlu0
        %v539 = vpop.trf.xlu0
        %v540 = vpop.trf.xlu0
        %vm541 = vcmask 261120
        %v543 = vsel %vm541, %v493, 0
        %v546 = vsel %vm541, %v494, 0
        %v549 = vsel %vm541, %v495, 0
        %v552 = vsel %vm541, %v496, 0
        %v555 = vsel %vm541, %v497, 0
        %v558 = vsel %vm541, %v498, 0
        %v561 = vsel %vm541, %v499, 0
        %v564 = vsel %vm541, %v500, 0
        %v567 = vsel %vm541, %v501, 0
        %v570 = vsel %vm541, %v502, 0
        %v573 = vsel %vm541, %v503, 0
        %v576 = vsel %vm541, %v504, 0
        %v579 = vsel %vm541, %v505, 0
        %v582 = vsel %vm541, %v506, 0
        %v585 = vsel %vm541, %v507, 0
        %v588 = vsel %vm541, %v508, 0
        %v591 = vsel %vm541, %v525, 0
        %v594 = vsel %vm541, %v526, 0
        %v597 = vsel %vm541, %v527, 0
        %v600 = vsel %vm541, %v528, 0
        %v603 = vsel %vm541, %v529, 0
        %v606 = vsel %vm541, %v530, 0
        %v609 = vsel %vm541, %v531, 0
        %v612 = vsel %vm541, %v532, 0
        %v615 = vsel %vm541, %v533, 0
        %v618 = vsel %vm541, %v534, 0
        %v621 = vsel %vm541, %v535, 0
        %v624 = vsel %vm541, %v536, 0
        %v627 = vsel %vm541, %v537, 0
        %v630 = vsel %vm541, %v538, 0
        %v633 = vsel %vm541, %v539, 0
        %v636 = vsel %vm541, %v540, 0
        %638 = vmatprep.subr.mxu0 %v454
        %639 = vmatpush1.msra.mxu0 %v453
        %640 = vmatprep.subr.mxu0 %v456
        %641 = vmatpush1.msra.mxu0 %v455
        %642 = vmatprep.subr.mxu0 %v458
        %643 = vmatpush1.msra.mxu0 %v457
        %644 = vmatprep.subr.mxu0 %v460
        %645 = vmatpush1.msra.mxu0 %v459
        %646 = vmatprep.subr.mxu0 0.0
        %647 = vmatpush1.msra.mxu0 0.0
        %648 = vmatprep.subr.mxu0 0.0
        %649 = vmatpush1.msra.mxu0 0.0
        %650 = vmatprep.subr.mxu0 0.0
        %651 = vmatpush1.msra.mxu0 0.0
        %652 = vmatprep.subr.mxu0 0.0
        %653 = vmatpush1.msra.mxu0 0.0
        %654 = vmatprep.subr.mxu0 0.0
        %655 = vmatpush1.msra.mxu0 0.0
        %656 = vmatprep.subr.mxu0 0.0
        %657 = vmatpush1.msra.mxu0 0.0
        %658 = vmatprep.subr.mxu0 0.0
        %659 = vmatpush1.msra.mxu0 0.0
        %660 = vmatprep.subr.mxu0 0.0
        %661 = vmatpush1.msra.mxu0 0.0
        %662 = vmatprep.subr.mxu0 0.0
        %663 = vmatpush1.msra.mxu0 0.0
        %664 = vmatprep.subr.mxu0 0.0
        %665 = vmatpush1.msra.mxu0 0.0
        %666 = vmatprep.subr.mxu0 0.0
        %667 = vmatpush1.msra.mxu0 0.0
        %668 = vmatprep.subr.mxu0 0.0
        %669 = vmatpush1.msra.mxu0 0.0
        %670 = vmatprep.subr.mxu0 0.0
        %671 = vmatpush1.msra.mxu0 0.0
        %672 = vmatprep.subr.mxu0 0.0
        %673 = vmatpush1.msra.mxu0 0.0
        %674 = vmatprep.subr.mxu0 0.0
        %675 = vmatpush1.msra.mxu0 0.0
        %676 = vmatprep.subr.mxu0 0.0
        %677 = vmatpush1.msra.mxu0 0.0
        %678 = vmatprep.subr.mxu0 0.0
        %679 = vmatpush1.msra.mxu0 0.0
        %680 = vmatprep.subr.mxu0 0.0
        %681 = vmatpush1.msra.mxu0 0.0
        %682 = vmatprep.subr.mxu0 0.0
        %683 = vmatpush1.msra.mxu0 0.0
        %684 = vmatprep.subr.mxu0 0.0
        %685 = vmatpush1.msra.mxu0 0.0
        %686 = vmatprep.subr.mxu0 0.0
        %687 = vmatpush1.msra.mxu0 0.0
        %688 = vmatprep.subr.mxu0 0.0
        %689 = vmatpush1.msra.mxu0 0.0
        %690 = vmatprep.subr.mxu0 0.0
        %691 = vmatpush1.msra.mxu0 0.0
        %692 = vmatprep.subr.mxu0 0.0
        %693 = vmatpush1.msra.mxu0 0.0
        %694 = vmatprep.subr.mxu0 0.0
        %695 = vmatpush1.msra.mxu0 0.0
        %696 = vmatprep.subr.mxu0 0.0
        %697 = vmatpush1.msra.mxu0 0.0
        %698 = vmatprep.subr.mxu0 0.0
        %699 = vmatpush1.msra.mxu0 0.0
        %700 = vmatprep.subr.mxu0 0.0
        %701 = vmatpush1.msra.mxu0 0.0
        %702 = vmatprep.mubr.f32.mxu0 0.0
        %703 = vmatmul.mubr.f32.gmra.mrb[0].mxu0 %v543
        %v704 = vpop.f32.mrb[0].mxu0
        %v705 = vadd.f32 0.0, %v704
        %v706 = vpop.f32.mrb[0].mxu0
        %v707 = vadd.f32 0.0, %v706
        %708 = vmatprep.mubr.f32.mxu0 0.0
        %709 = vmatmul.mubr.f32.gmra.mrb[0].mxu0 %v546
        %v710 = vpop.f32.mrb[0].mxu0
        %v711 = vadd.f32 0.0, %v710
        %v712 = vpop.f32.mrb[0].mxu0
        %v713 = vadd.f32 0.0, %v712
        %714 = vmatprep.mubr.f32.mxu0 0.0
        %715 = vmatmul.mubr.f32.gmra.mrb[0].mxu0 %v549
        %v716 = vpop.f32.mrb[0].mxu0
        %v717 = vadd.f32 0.0, %v716
        %v718 = vpop.f32.mrb[0].mxu0
        %v719 = vadd.f32 0.0, %v718
        %720 = vmatprep.mubr.f32.mxu0 0.0
        %721 = vmatmul.mubr.f32.gmra.mrb[0].mxu0 %v552
        %v722 = vpop.f32.mrb[0].mxu0
        %v723 = vadd.f32 0.0, %v722
        %v724 = vpop.f32.mrb[0].mxu0
        %v725 = vadd.f32 0.0, %v724
        %726 = vmatprep.mubr.f32.mxu0 0.0
        %727 = vmatmul.mubr.f32.gmra.mrb[0].mxu0 %v555
        %v728 = vpop.f32.mrb[0].mxu0
        %v729 = vadd.f32 0.0, %v728
        %v730 = vpop.f32.mrb[0].mxu0
        %v731 = vadd.f32 0.0, %v730
        %732 = vmatprep.mubr.f32.mxu0 0.0
        %733 = vmatmul.mubr.f32.gmra.mrb[0].mxu0 %v558
        %v734 = vpop.f32.mrb[0].mxu0
        %v735 = vadd.f32 0.0, %v734
        %v736 = vpop.f32.mrb[0].mxu0
        %v737 = vadd.f32 0.0, %v736
        %738 = vmatprep.mubr.f32.mxu0 0.0
        %739 = vmatmul.mubr.f32.gmra.mrb[0].mxu0 %v561
        %v740 = vpop.f32.mrb[0].mxu0
        %v741 = vadd.f32 0.0, %v740
        %v742 = vpop.f32.mrb[0].mxu0
        %v743 = vadd.f32 0.0, %v742
        %744 = vmatprep.mubr.f32.mxu0 0.0
        %745 = vmatmul.mubr.f32.gmra.mrb[0].mxu0 %v564
        %v746 = vpop.f32.mrb[0].mxu0
        %v747 = vadd.f32 0.0, %v746
        %v748 = vpop.f32.mrb[0].mxu0
        %v749 = vadd.f32 0.0, %v748
        %750 = vmatprep.mubr.f32.mxu0 0.0
        %751 = vmatmul.mubr.f32.gmra.mrb[0].mxu0 %v567
        %v752 = vpop.f32.mrb[0].mxu0
        %v753 = vadd.f32 0.0, %v752
        %v754 = vpop.f32.mrb[0].mxu0
        %v755 = vadd.f32 0.0, %v754
        %756 = vmatprep.mubr.f32.mxu0 0.0
        %757 = vmatmul.mubr.f32.gmra.mrb[0].mxu0 %v570
        %v758 = vpop.f32.mrb[0].mxu0
        %v759 = vadd.f32 0.0, %v758
        %v760 = vpop.f32.mrb[0].mxu0
        %v761 = vadd.f32 0.0, %v760
        %762 = vmatprep.mubr.f32.mxu0 0.0
        %763 = vmatmul.mubr.f32.gmra.mrb[0].mxu0 %v573
        %v764 = vpop.f32.mrb[0].mxu0
        %v765 = vadd.f32 0.0, %v764
        %v766 = vpop.f32.mrb[0].mxu0
        %v767 = vadd.f32 0.0, %v766
        %768 = vmatprep.mubr.f32.mxu0 0.0
        %769 = vmatmul.mubr.f32.gmra.mrb[0].mxu0 %v576
        %v770 = vpop.f32.mrb[0].mxu0
        %v771 = vadd.f32 0.0, %v770
        %v772 = vpop.f32.mrb[0].mxu0
        %v773 = vadd.f32 0.0, %v772
        %774 = vmatprep.mubr.f32.mxu0 0.0
        %775 = vmatmul.mubr.f32.gmra.mrb[0].mxu0 %v579
        %v776 = vpop.f32.mrb[0].mxu0
        %v777 = vadd.f32 0.0, %v776
        %v778 = vpop.f32.mrb[0].mxu0
        %v779 = vadd.f32 0.0, %v778
        %780 = vmatprep.mubr.f32.mxu0 0.0
        %781 = vmatmul.mubr.f32.gmra.mrb[0].mxu0 %v582
        %v782 = vpop.f32.mrb[0].mxu0
        %v783 = vadd.f32 0.0, %v782
        %v784 = vpop.f32.mrb[0].mxu0
        %v785 = vadd.f32 0.0, %v784
        %786 = vmatprep.mubr.f32.mxu0 0.0
        %787 = vmatmul.mubr.f32.gmra.mrb[0].mxu0 %v585
        %v788 = vpop.f32.mrb[0].mxu0
        %v789 = vadd.f32 0.0, %v788
        %v790 = vpop.f32.mrb[0].mxu0
        %v791 = vadd.f32 0.0, %v790
        %792 = vmatprep.mubr.f32.mxu0 0.0
        %793 = vmatmul.mubr.f32.gmra.mrb[0].mxu0 %v588
        %v794 = vpop.f32.mrb[0].mxu0
        %v795 = vadd.f32 0.0, %v794
        %v796 = vpop.f32.mrb[0].mxu0
        %v797 = vadd.f32 0.0, %v796
        %798 = vmatprep.mubr.f32.mxu0 0.0
        %799 = vmatmul.mubr.f32.gmra.mrb[0].mxu0 %v591
        %v800 = vpop.f32.mrb[0].mxu0
        %v801 = vadd.f32 0.0, %v800
        %v802 = vpop.f32.mrb[0].mxu0
        %v803 = vadd.f32 0.0, %v802
        %804 = vmatprep.mubr.f32.mxu0 0.0
        %805 = vmatmul.mubr.f32.gmra.mrb[0].mxu0 %v594
        %v806 = vpop.f32.mrb[0].mxu0
        %v807 = vadd.f32 0.0, %v806
        %v808 = vpop.f32.mrb[0].mxu0
        %v809 = vadd.f32 0.0, %v808
        %810 = vmatprep.mubr.f32.mxu0 0.0
        %811 = vmatmul.mubr.f32.gmra.mrb[0].mxu0 %v597
        %v812 = vpop.f32.mrb[0].mxu0
        %v813 = vadd.f32 0.0, %v812
        %v814 = vpop.f32.mrb[0].mxu0
        %v815 = vadd.f32 0.0, %v814
        %816 = vmatprep.mubr.f32.mxu0 0.0
        %817 = vmatmul.mubr.f32.gmra.mrb[0].mxu0 %v600
        %v818 = vpop.f32.mrb[0].mxu0
        %v819 = vadd.f32 0.0, %v818
        %v820 = vpop.f32.mrb[0].mxu0
        %v821 = vadd.f32 0.0, %v820
        %822 = vmatprep.mubr.f32.mxu0 0.0
        %823 = vmatmul.mubr.f32.gmra.mrb[0].mxu0 %v603
        %v824 = vpop.f32.mrb[0].mxu0
        %v825 = vadd.f32 0.0, %v824
        %v826 = vpop.f32.mrb[0].mxu0
        %v827 = vadd.f32 0.0, %v826
        %828 = vmatprep.mubr.f32.mxu0 0.0
        %829 = vmatmul.mubr.f32.gmra.mrb[0].mxu0 %v606
        %v830 = vpop.f32.mrb[0].mxu0
        %v831 = vadd.f32 0.0, %v830
        %v832 = vpop.f32.mrb[0].mxu0
        %v833 = vadd.f32 0.0, %v832
        %834 = vmatprep.mubr.f32.mxu0 0.0
        %835 = vmatmul.mubr.f32.gmra.mrb[0].mxu0 %v609
        %v836 = vpop.f32.mrb[0].mxu0
        %v837 = vadd.f32 0.0, %v836
        %v838 = vpop.f32.mrb[0].mxu0
        %v839 = vadd.f32 0.0, %v838
        %840 = vmatprep.mubr.f32.mxu0 0.0
        %841 = vmatmul.mubr.f32.gmra.mrb[0].mxu0 %v612
        %v842 = vpop.f32.mrb[0].mxu0
        %v843 = vadd.f32 0.0, %v842
        %v844 = vpop.f32.mrb[0].mxu0
        %v845 = vadd.f32 0.0, %v844
        %846 = vmatprep.mubr.f32.mxu0 0.0
        %847 = vmatmul.mubr.f32.gmra.mrb[0].mxu0 %v615
        %v848 = vpop.f32.mrb[0].mxu0
        %v849 = vadd.f32 0.0, %v848
        %v850 = vpop.f32.mrb[0].mxu0
        %v851 = vadd.f32 0.0, %v850
        %852 = vmatprep.mubr.f32.mxu0 0.0
        %853 = vmatmul.mubr.f32.gmra.mrb[0].mxu0 %v618
        %v854 = vpop.f32.mrb[0].mxu0
        %v855 = vadd.f32 0.0, %v854
        %v856 = vpop.f32.mrb[0].mxu0
        %v857 = vadd.f32 0.0, %v856
        %858 = vmatprep.mubr.f32.mxu0 0.0
        %859 = vmatmul.mubr.f32.gmra.mrb[0].mxu0 %v621
        %v860 = vpop.f32.mrb[0].mxu0
        %v861 = vadd.f32 0.0, %v860
        %v862 = vpop.f32.mrb[0].mxu0
        %v863 = vadd.f32 0.0, %v862
        %864 = vmatprep.mubr.f32.mxu0 0.0
        %865 = vmatmul.mubr.f32.gmra.mrb[0].mxu0 %v624
        %v866 = vpop.f32.mrb[0].mxu0
        %v867 = vadd.f32 0.0, %v866
        %v868 = vpop.f32.mrb[0].mxu0
        %v869 = vadd.f32 0.0, %v868
        %870 = vmatprep.mubr.f32.mxu0 0.0
        %871 = vmatmul.mubr.f32.gmra.mrb[0].mxu0 %v627
        %v872 = vpop.f32.mrb[0].mxu0
        %v873 = vadd.f32 0.0, %v872
        %v874 = vpop.f32.mrb[0].mxu0
        %v875 = vadd.f32 0.0, %v874
        %876 = vmatprep.mubr.f32.mxu0 0.0
        %877 = vmatmul.mubr.f32.gmra.mrb[0].mxu0 %v630
        %v878 = vpop.f32.mrb[0].mxu0
        %v879 = vadd.f32 0.0, %v878
        %v880 = vpop.f32.mrb[0].mxu0
        %v881 = vadd.f32 0.0, %v880
        %882 = vmatprep.mubr.f32.mxu0 0.0
        %883 = vmatmul.mubr.f32.gmra.mrb[0].mxu0 %v633
        %v884 = vpop.f32.mrb[0].mxu0
        %v885 = vadd.f32 0.0, %v884
        %v886 = vpop.f32.mrb[0].mxu0
        %v887 = vadd.f32 0.0, %v886
        %888 = vmatprep.mubr.f32.mxu0 0.0
        %889 = vmatmul.mubr.f32.gmra.mrb[0].mxu0 %v636
        %v890 = vpop.f32.mrb[0].mxu0
        %v891 = vadd.f32 0.0, %v890
        %v892 = vpop.f32.mrb[0].mxu0
        %v893 = vadd.f32 0.0, %v892
        %894 = vdwg.mxu0
        %v895 = vmax.f32 %v705, %v717
        %v896 = vmax.f32 %v711, %v723
        %v897 = vmax.f32 %v895, %v729
        %v898 = vmax.f32 %v896, %v735
        %v899 = vmax.f32 %v897, %v741
        %v900 = vmax.f32 %v898, %v747
        %v901 = vmax.f32 %v899, %v753
        %v902 = vmax.f32 %v900, %v759
        %v903 = vmax.f32 %v901, %v765
        %v904 = vmax.f32 %v902, %v771
        %v905 = vmax.f32 %v903, %v777
        %v906 = vmax.f32 %v904, %v783
        %v907 = vmax.f32 %v905, %v789
        %v908 = vmax.f32 %v906, %v795
        %v909 = vmax.f32 %v907, %v801
        %v910 = vmax.f32 %v908, %v807
        %v911 = vmax.f32 %v909, %v813
        %v912 = vmax.f32 %v910, %v819
        %v913 = vmax.f32 %v911, %v825
        %v914 = vmax.f32 %v912, %v831
        %v915 = vmax.f32 %v913, %v837
        %v916 = vmax.f32 %v914, %v843
        %v917 = vmax.f32 %v915, %v849
        %v918 = vmax.f32 %v916, %v855
        %v919 = vmax.f32 %v917, %v861
        %v920 = vmax.f32 %v918, %v867
        %v921 = vmax.f32 %v919, %v873
        %v922 = vmax.f32 %v920, %v879
        %v923 = vmax.f32 %v921, %v885
        %v924 = vmax.f32 %v922, %v891
        %v925 = vmax.f32 %v923, %v924
        %v926 = vrot.slane %v925, 4
        %v927 = vmax.f32 %v925, %v926
        %v928 = vrot.slane %v927, 2
        %v929 = vmax.f32 %v927, %v928
        %v930 = vrot.slane %v929, 1
        %v931 = vmax.f32 %v929, %v930
        %v932 = vmax.f32 %v707, %v719
        %v933 = vmax.f32 %v713, %v725
        %v934 = vmax.f32 %v932, %v731
        %v935 = vmax.f32 %v933, %v737
        %v936 = vmax.f32 %v934, %v743
        %v937 = vmax.f32 %v935, %v749
        %v938 = vmax.f32 %v936, %v755
        %v939 = vmax.f32 %v937, %v761
        %v940 = vmax.f32 %v938, %v767
        %v941 = vmax.f32 %v939, %v773
        %v942 = vmax.f32 %v940, %v779
        %v943 = vmax.f32 %v941, %v785
        %v944 = vmax.f32 %v942, %v791
        %v945 = vmax.f32 %v943, %v797
        %v946 = vmax.f32 %v944, %v803
        %v947 = vmax.f32 %v945, %v809
        %v948 = vmax.f32 %v946, %v815
        %v949 = vmax.f32 %v947, %v821
        %v950 = vmax.f32 %v948, %v827
        %v951 = vmax.f32 %v949, %v833
        %v952 = vmax.f32 %v950, %v839
        %v953 = vmax.f32 %v951, %v845
        %v954 = vmax.f32 %v952, %v851
        %v955 = vmax.f32 %v953, %v857
        %v956 = vmax.f32 %v954, %v863
        %v957 = vmax.f32 %v955, %v869
        %v958 = vmax.f32 %v956, %v875
        %v959 = vmax.f32 %v957, %v881
        %v960 = vmax.f32 %v958, %v887
        %v961 = vmax.f32 %v959, %v893
        %v962 = vmax.f32 %v960, %v961
        %v963 = vrot.slane %v962, 4
        %v964 = vmax.f32 %v962, %v963
        %v965 = vrot.slane %v964, 2
        %v966 = vmax.f32 %v964, %v965
        %v967 = vrot.slane %v966, 1
        %v968 = vmax.f32 %v966, %v967
        %v969 = vsub.f32 %v705, %v931
        %v970 = vsub.f32 %v707, %v968
        %v971 = vsub.f32 %v711, %v931
        %v972 = vsub.f32 %v713, %v968
        %v973 = vsub.f32 %v717, %v931
        %v974 = vsub.f32 %v719, %v968
        %v975 = vsub.f32 %v723, %v931
        %v976 = vsub.f32 %v725, %v968
        %v977 = vsub.f32 %v729, %v931
        %v978 = vsub.f32 %v731, %v968
        %v979 = vsub.f32 %v735, %v931
        %v980 = vsub.f32 %v737, %v968
        %v981 = vsub.f32 %v741, %v931
        %v982 = vsub.f32 %v743, %v968
        %v983 = vsub.f32 %v747, %v931
        %v984 = vsub.f32 %v749, %v968
        %v985 = vsub.f32 %v753, %v931
        %v986 = vsub.f32 %v755, %v968
        %v987 = vsub.f32 %v759, %v931
        %v988 = vsub.f32 %v761, %v968
        %v989 = vsub.f32 %v765, %v931
        %v990 = vsub.f32 %v767, %v968
        %v991 = vsub.f32 %v771, %v931
        %v992 = vsub.f32 %v773, %v968
        %v993 = vsub.f32 %v777, %v931
        %v994 = vsub.f32 %v779, %v968
        %v995 = vsub.f32 %v783, %v931
        %v996 = vsub.f32 %v785, %v968
        %v997 = vsub.f32 %v789, %v931
        %v998 = vsub.f32 %v791, %v968
        %v999 = vsub.f32 %v795, %v931
        %v1000 = vsub.f32 %v797, %v968
        %v1001 = vsub.f32 %v801, %v931
        %v1002 = vsub.f32 %v803, %v968
        %v1003 = vsub.f32 %v807, %v931
        %v1004 = vsub.f32 %v809, %v968
        %v1005 = vsub.f32 %v813, %v931
        %v1006 = vsub.f32 %v815, %v968
        %v1007 = vsub.f32 %v819, %v931
        %v1008 = vsub.f32 %v821, %v968
        %v1009 = vsub.f32 %v825, %v931
        %v1010 = vsub.f32 %v827, %v968
        %v1011 = vsub.f32 %v831, %v931
        %v1012 = vsub.f32 %v833, %v968
        %v1013 = vsub.f32 %v837, %v931
        %v1014 = vsub.f32 %v839, %v968
        %v1015 = vsub.f32 %v843, %v931
        %v1016 = vsub.f32 %v845, %v968
        %v1017 = vsub.f32 %v849, %v931
        %v1018 = vsub.f32 %v851, %v968
        %v1019 = vsub.f32 %v855, %v931
        %v1020 = vsub.f32 %v857, %v968
        %v1021 = vsub.f32 %v861, %v931
        %v1022 = vsub.f32 %v863, %v968
        %v1023 = vsub.f32 %v867, %v931
        %v1024 = vsub.f32 %v869, %v968
        %v1025 = vsub.f32 %v873, %v931
        %v1026 = vsub.f32 %v875, %v968
        %v1027 = vsub.f32 %v879, %v931
        %v1028 = vsub.f32 %v881, %v968
        %v1029 = vsub.f32 %v885, %v931
        %v1030 = vsub.f32 %v887, %v968
        %v1031 = vsub.f32 %v891, %v931
        %v1032 = vsub.f32 %v893, %v968
        %v1033 = vmul.f32 %v969, 1.442695
        %v1034 = vpow.pop %v1033
        %v1035 = vmul.f32 %v970, 1.442695
        %v1036 = vpow.pop %v1035
        %v1037 = vmul.f32 %v971, 1.442695
        %v1038 = vpow.pop %v1037
        %v1039 = vmul.f32 %v972, 1.442695
        %v1040 = vpow.pop %v1039
        %v1041 = vmul.f32 %v973, 1.442695
        %v1042 = vpow.pop %v1041
        %v1043 = vmul.f32 %v974, 1.442695
        %v1044 = vpow.pop %v1043
        %v1045 = vmul.f32 %v975, 1.442695
        %v1046 = vpow.pop %v1045
        %v1047 = vmul.f32 %v976, 1.442695
        %v1048 = vpow.pop %v1047
        %v1049 = vmul.f32 %v977, 1.442695
        %v1050 = vpow.pop %v1049
        %v1051 = vmul.f32 %v978, 1.442695
        %v1052 = vpow.pop %v1051
        %v1053 = vmul.f32 %v979, 1.442695
        %v1054 = vpow.pop %v1053
        %v1055 = vmul.f32 %v980, 1.442695
        %v1056 = vpow.pop %v1055
        %v1057 = vmul.f32 %v981, 1.442695
        %v1058 = vpow.pop %v1057
        %v1059 = vmul.f32 %v982, 1.442695
        %v1060 = vpow.pop %v1059
        %v1061 = vmul.f32 %v983, 1.442695
        %v1062 = vpow.pop %v1061
        %v1063 = vmul.f32 %v984, 1.442695
        %v1064 = vpow.pop %v1063
        %v1065 = vmul.f32 %v985, 1.442695
        %v1066 = vpow.pop %v1065
        %v1067 = vmul.f32 %v986, 1.442695
        %v1068 = vpow.pop %v1067
        %v1069 = vmul.f32 %v987, 1.442695
        %v1070 = vpow.pop %v1069
        %v1071 = vmul.f32 %v988, 1.442695
        %v1072 = vpow.pop %v1071
        %v1073 = vmul.f32 %v989, 1.442695
        %v1074 = vpow.pop %v1073
        %v1075 = vmul.f32 %v990, 1.442695
        %v1076 = vpow.pop %v1075
        %v1077 = vmul.f32 %v991, 1.442695
        %v1078 = vpow.pop %v1077
        %v1079 = vmul.f32 %v992, 1.442695
        %v1080 = vpow.pop %v1079
        %v1081 = vmul.f32 %v993, 1.442695
        %v1082 = vpow.pop %v1081
        %v1083 = vmul.f32 %v994, 1.442695
        %v1084 = vpow.pop %v1083
        %v1085 = vmul.f32 %v995, 1.442695
        %v1086 = vpow.pop %v1085
        %v1087 = vmul.f32 %v996, 1.442695
        %v1088 = vpow.pop %v1087
        %v1089 = vmul.f32 %v997, 1.442695
        %v1090 = vpow.pop %v1089
        %v1091 = vmul.f32 %v998, 1.442695
        %v1092 = vpow.pop %v1091
        %v1093 = vmul.f32 %v999, 1.442695
        %v1094 = vpow.pop %v1093
        %v1095 = vmul.f32 %v1000, 1.442695
        %v1096 = vpow.pop %v1095
        %v1097 = vmul.f32 %v1001, 1.442695
        %v1098 = vpow.pop %v1097
        %v1099 = vmul.f32 %v1002, 1.442695
        %v1100 = vpow.pop %v1099
        %v1101 = vmul.f32 %v1003, 1.442695
        %v1102 = vpow.pop %v1101
        %v1103 = vmul.f32 %v1004, 1.442695
        %v1104 = vpow.pop %v1103
        %v1105 = vmul.f32 %v1005, 1.442695
        %v1106 = vpow.pop %v1105
        %v1107 = vmul.f32 %v1006, 1.442695
        %v1108 = vpow.pop %v1107
        %v1109 = vmul.f32 %v1007, 1.442695
        %v1110 = vpow.pop %v1109
        %v1111 = vmul.f32 %v1008, 1.442695
        %v1112 = vpow.pop %v1111
        %v1113 = vmul.f32 %v1009, 1.442695
        %v1114 = vpow.pop %v1113
        %v1115 = vmul.f32 %v1010, 1.442695
        %v1116 = vpow.pop %v1115
        %v1117 = vmul.f32 %v1011, 1.442695
        %v1118 = vpow.pop %v1117
        %v1119 = vmul.f32 %v1012, 1.442695
        %v1120 = vpow.pop %v1119
        %v1121 = vmul.f32 %v1013, 1.442695
        %v1122 = vpow.pop %v1121
        %v1123 = vmul.f32 %v1014, 1.442695
        %v1124 = vpow.pop %v1123
        %v1125 = vmul.f32 %v1015, 1.442695
        %v1126 = vpow.pop %v1125
        %v1127 = vmul.f32 %v1016, 1.442695
        %v1128 = vpow.pop %v1127
        %v1129 = vmul.f32 %v1017, 1.442695
        %v1130 = vpow.pop %v1129
        %v1131 = vmul.f32 %v1018, 1.442695
        %v1132 = vpow.pop %v1131
        %v1133 = vmul.f32 %v1019, 1.442695
        %v1134 = vpow.pop %v1133
        %v1135 = vmul.f32 %v1020, 1.442695
        %v1136 = vpow.pop %v1135
        %v1137 = vmul.f32 %v1021, 1.442695
        %v1138 = vpow.pop %v1137
        %v1139 = vmul.f32 %v1022, 1.442695
        %v1140 = vpow.pop %v1139
        %v1141 = vmul.f32 %v1023, 1.442695
        %v1142 = vpow.pop %v1141
        %v1143 = vmul.f32 %v1024, 1.442695
        %v1144 = vpow.pop %v1143
        %v1145 = vmul.f32 %v1025, 1.442695
        %v1146 = vpow.pop %v1145
        %v1147 = vmul.f32 %v1026, 1.442695
        %v1148 = vpow.pop %v1147
        %v1149 = vmul.f32 %v1027, 1.442695
        %v1150 = vpow.pop %v1149
        %v1151 = vmul.f32 %v1028, 1.442695
        %v1152 = vpow.pop %v1151
        %v1153 = vmul.f32 %v1029, 1.442695
        %v1154 = vpow.pop %v1153
        %v1155 = vmul.f32 %v1030, 1.442695
        %v1156 = vpow.pop %v1155
        %v1157 = vmul.f32 %v1031, 1.442695
        %v1158 = vpow.pop %v1157
        %v1159 = vmul.f32 %v1032, 1.442695
        %v1160 = vpow.pop %v1159
        %v1161 = vadd.f32 %v1034, %v1038
        %v1162 = vadd.f32 %v1161, %v1042
        %v1163 = vadd.f32 %v1162, %v1046
        %v1164 = vadd.f32 %v1163, %v1050
        %v1165 = vadd.f32 %v1164, %v1054
        %v1166 = vadd.f32 %v1165, %v1058
        %v1167 = vadd.f32 %v1166, %v1062
        %v1168 = vadd.f32 %v1167, %v1066
        %v1169 = vadd.f32 %v1168, %v1070
        %v1170 = vadd.f32 %v1169, %v1074
        %v1171 = vadd.f32 %v1170, %v1078
        %v1172 = vadd.f32 %v1171, %v1082
        %v1173 = vadd.f32 %v1172, %v1086
        %v1174 = vadd.f32 %v1173, %v1090
        %v1175 = vadd.f32 %v1174, %v1094
        %v1176 = vadd.f32 %v1175, %v1098
        %v1177 = vadd.f32 %v1176, %v1102
        %v1178 = vadd.f32 %v1177, %v1106
        %v1179 = vadd.f32 %v1178, %v1110
        %v1180 = vadd.f32 %v1179, %v1114
        %v1181 = vadd.f32 %v1180, %v1118
        %v1182 = vadd.f32 %v1181, %v1122
        %v1183 = vadd.f32 %v1182, %v1126
        %v1184 = vadd.f32 %v1183, %v1130
        %v1185 = vadd.f32 %v1184, %v1134
        %v1186 = vadd.f32 %v1185, %v1138
        %v1187 = vadd.f32 %v1186, %v1142
        %v1188 = vadd.f32 %v1187, %v1146
        %v1189 = vadd.f32 %v1188, %v1150
        %v1190 = vadd.f32 %v1189, %v1154
        %v1191 = vadd.f32 %v1190, %v1158
        %v1192 = vrot.slane %v1191, 4
        %v1193 = vadd.f32 %v1191, %v1192
        %v1194 = vrot.slane %v1193, 2
        %v1195 = vadd.f32 %v1193, %v1194
        %v1196 = vrot.slane %v1195, 1
        %v1197 = vadd.f32 %v1195, %v1196
        %v1198 = vadd.f32 %v1036, %v1040
        %v1199 = vadd.f32 %v1198, %v1044
        %v1200 = vadd.f32 %v1199, %v1048
        %v1201 = vadd.f32 %v1200, %v1052
        %v1202 = vadd.f32 %v1201, %v1056
        %v1203 = vadd.f32 %v1202, %v1060
        %v1204 = vadd.f32 %v1203, %v1064
        %v1205 = vadd.f32 %v1204, %v1068
        %v1206 = vadd.f32 %v1205, %v1072
        %v1207 = vadd.f32 %v1206, %v1076
        %v1208 = vadd.f32 %v1207, %v1080
        %v1209 = vadd.f32 %v1208, %v1084
        %v1210 = vadd.f32 %v1209, %v1088
        %v1211 = vadd.f32 %v1210, %v1092
        %v1212 = vadd.f32 %v1211, %v1096
        %v1213 = vadd.f32 %v1212, %v1100
        %v1214 = vadd.f32 %v1213, %v1104
        %v1215 = vadd.f32 %v1214, %v1108
        %v1216 = vadd.f32 %v1215, %v1112
        %v1217 = vadd.f32 %v1216, %v1116
        %v1218 = vadd.f32 %v1217, %v1120
        %v1219 = vadd.f32 %v1218, %v1124
        %v1220 = vadd.f32 %v1219, %v1128
        %v1221 = vadd.f32 %v1220, %v1132
        %v1222 = vadd.f32 %v1221, %v1136
        %v1223 = vadd.f32 %v1222, %v1140
        %v1224 = vadd.f32 %v1223, %v1144
        %v1225 = vadd.f32 %v1224, %v1148
        %v1226 = vadd.f32 %v1225, %v1152
        %v1227 = vadd.f32 %v1226, %v1156
        %v1228 = vadd.f32 %v1227, %v1160
        %v1229 = vrot.slane %v1228, 4
        %v1230 = vadd.f32 %v1228, %v1229
        %v1231 = vrot.slane %v1230, 2
        %v1232 = vadd.f32 %v1230, %v1231
        %v1233 = vrot.slane %v1232, 1
        %v1234 = vadd.f32 %v1232, %v1233
        %v1235 = vld [vmem:[#allocation3] sm:$0xff]
        %v1236 = vld [vmem:[#allocation3 + $0x8] sm:$0xff]
        %v1237 = vld [vmem:[#allocation3 + $0x10] sm:$0xff]
        %v1238 = vld [vmem:[#allocation3 + $0x18] sm:$0xff]
        %v1239 = vld [vmem:[#allocation3 + $0x20] sm:$0xff]
        %v1240 = vld [vmem:[#allocation3 + $0x28] sm:$0xff]
        %v1241 = vld [vmem:[#allocation3 + $0x30] sm:$0xff]
        %v1242 = vld [vmem:[#allocation3 + $0x38] sm:$0xff]
        %1243 = vmatprep.subr.mxu0 %v1036
        %1244 = vmatpush1.msra.mxu0 %v1034
        %1245 = vmatprep.subr.mxu0 %v1040
        %1246 = vmatpush1.msra.mxu0 %v1038
        %1247 = vmatprep.subr.mxu0 %v1044
        %1248 = vmatpush1.msra.mxu0 %v1042
        %1249 = vmatprep.subr.mxu0 %v1048
        %1250 = vmatpush1.msra.mxu0 %v1046
        %1251 = vmatprep.subr.mxu0 %v1052
        %1252 = vmatpush1.msra.mxu0 %v1050
        %1253 = vmatprep.subr.mxu0 %v1056
        %1254 = vmatpush1.msra.mxu0 %v1054
        %1255 = vmatprep.subr.mxu0 %v1060
        %1256 = vmatpush1.msra.mxu0 %v1058
        %1257 = vmatprep.subr.mxu0 %v1064
        %1258 = vmatpush1.msra.mxu0 %v1062
        %1259 = vmatprep.subr.mxu0 %v1068
        %1260 = vmatpush1.msra.mxu0 %v1066
        %1261 = vmatprep.subr.mxu0 %v1072
        %1262 = vmatpush1.msra.mxu0 %v1070
        %1263 = vmatprep.subr.mxu0 %v1076
        %1264 = vmatpush1.msra.mxu0 %v1074
        %1265 = vmatprep.subr.mxu0 %v1080
        %1266 = vmatpush1.msra.mxu0 %v1078
        %1267 = vmatprep.subr.mxu0 %v1084
        %1268 = vmatpush1.msra.mxu0 %v1082
        %1269 = vmatprep.subr.mxu0 %v1088
        %1270 = vmatpush1.msra.mxu0 %v1086
        %1271 = vmatprep.subr.mxu0 %v1092
        %1272 = vmatpush1.msra.mxu0 %v1090
        %1273 = vmatprep.subr.mxu0 %v1096
        %1274 = vmatpush1.msra.mxu0 %v1094
        %1275 = vmatprep.subr.mxu0 %v1100
        %1276 = vmatpush1.msra.mxu0 %v1098
        %1277 = vmatprep.subr.mxu0 %v1104
        %1278 = vmatpush1.msra.mxu0 %v1102
        %1279 = vmatprep.subr.mxu0 %v1108
        %1280 = vmatpush1.msra.mxu0 %v1106
        %1281 = vmatprep.subr.mxu0 %v1112
        %1282 = vmatpush1.msra.mxu0 %v1110
        %1283 = vmatprep.subr.mxu0 %v1116
        %1284 = vmatpush1.msra.mxu0 %v1114
        %1285 = vmatprep.subr.mxu0 %v1120
        %1286 = vmatpush1.msra.mxu0 %v1118
        %1287 = vmatprep.subr.mxu0 %v1124
        %1288 = vmatpush1.msra.mxu0 %v1122
        %1289 = vmatprep.subr.mxu0 %v1128
        %1290 = vmatpush1.msra.mxu0 %v1126
        %1291 = vmatprep.subr.mxu0 %v1132
        %1292 = vmatpush1.msra.mxu0 %v1130
        %1293 = vmatprep.subr.mxu0 %v1136
        %1294 = vmatpush1.msra.mxu0 %v1134
        %1295 = vmatprep.subr.mxu0 %v1140
        %1296 = vmatpush1.msra.mxu0 %v1138
        %1297 = vmatprep.subr.mxu0 %v1144
        %1298 = vmatpush1.msra.mxu0 %v1142
        %1299 = vmatprep.subr.mxu0 %v1148
        %1300 = vmatpush1.msra.mxu0 %v1146
        %1301 = vmatprep.subr.mxu0 %v1152
        %1302 = vmatpush1.msra.mxu0 %v1150
        %1303 = vmatprep.subr.mxu0 %v1156
        %1304 = vmatpush1.msra.mxu0 %v1154
        %1305 = vmatprep.subr.mxu0 %v1160
        %1306 = vmatpush1.msra.mxu0 %v1158
        %1307 = vmatprep.mubr.f32.mxu0 %v1236
        %1308 = vmatmul.mubr.f32.gmra.mrb[0].mxu0 %v1235
        %v1309 = vpop.f32.mrb[0].mxu0
        %v1310 = vadd.f32 0.0, %v1309
        %v1311 = vpop.f32.mrb[0].mxu0
        %v1312 = vadd.f32 0.0, %v1311
        %1313 = vmatprep.mubr.f32.mxu0 %v1238
        %1314 = vmatmul.mubr.f32.gmra.mrb[0].mxu0 %v1237
        %v1315 = vpop.f32.mrb[0].mxu0
        %v1316 = vadd.f32 0.0, %v1315
        %v1317 = vpop.f32.mrb[0].mxu0
        %v1318 = vadd.f32 0.0, %v1317
        %1319 = vmatprep.mubr.f32.mxu0 %v1240
        %1320 = vmatmul.mubr.f32.gmra.mrb[0].mxu0 %v1239
        %v1321 = vpop.f32.mrb[0].mxu0
        %v1322 = vadd.f32 0.0, %v1321
        %v1323 = vpop.f32.mrb[0].mxu0
        %v1324 = vadd.f32 0.0, %v1323
        %1325 = vmatprep.mubr.f32.mxu0 %v1242
        %1326 = vmatmul.mubr.f32.gmra.mrb[0].mxu0 %v1241
        %v1327 = vpop.f32.mrb[0].mxu0
        %v1328 = vadd.f32 0.0, %v1327
        %v1329 = vpop.f32.mrb[0].mxu0
        %v1330 = vadd.f32 0.0, %v1329
        %1331 = vdwg.mxu0
        %s1332 = sld [smem:[#allocation5]]
        %v1333 = vrcp.pop %v1197
        %v1334 = vrcp.pop %v1234
        %v1335 = vstv %s1332
        %v1336 = vmul.f32 %v1335, %v1333
        %v1337 = vmul.f32 %v1335, %v1334
        %v1338 = vmul.f32 %v1310, %v1336
        %v1339 = vmul.f32 %v1312, %v1337
        %v1340 = vmul.f32 %v1316, %v1336
        %v1341 = vmul.f32 %v1318, %v1337
        %v1342 = vmul.f32 %v1322, %v1336
        %v1343 = vmul.f32 %v1324, %v1337
        %v1344 = vmul.f32 %v1328, %v1336
        %v1345 = vmul.f32 %v1330, %v1337
        %v1346 = vld [vmem:[%s3] sm:$0xff]
        %v1347 = vld [vmem:[%s3 + $0x8] sm:$0xff]
        %v1348 = vld [vmem:[%s3 + $0x10] sm:$0xff]
        %v1349 = vld [vmem:[%s3 + $0x18] sm:$0xff]
        %1351 = vset.pattern.permute.xlu0 0
        %1352 = vperm.xlu0 %1351, %v1346
        %v1353 = vpop.permute.xlu0 %1352
        %1356 = vset.pattern.permute.xlu0 0
        %1357 = vperm.xlu0 %1356, %v1347
        %v1358 = vpop.permute.xlu0 %1357
        %1361 = vset.pattern.permute.xlu0 0
        %1362 = vperm.xlu0 %1361, %v1348
        %v1363 = vpop.permute.xlu0 %1362
        %1366 = vset.pattern.permute.xlu0 0
        %1367 = vperm.xlu0 %1366, %v1349
        %v1368 = vpop.permute.xlu0 %1367
        %v1370 = vadd.f32 %v1338, %v1353
        %v1371 = vadd.f32 %v1339, %v1353
        %v1372 = vadd.f32 %v1340, %v1358
        %v1373 = vadd.f32 %v1341, %v1358
        %v1374 = vadd.f32 %v1342, %v1363
        %v1375 = vadd.f32 %v1343, %v1363
        %v1376 = vadd.f32 %v1344, %v1368
        %v1377 = vadd.f32 %v1345, %v1368
        %v1378 = vadd.f32 %v1370, %v461
        %v1379 = vadd.f32 %v1371, %v462
        %v1380 = vadd.f32 %v1372, %v463
        %v1381 = vadd.f32 %v1373, %v464
        %v1382 = vadd.f32 %v1374, %v465
        %v1383 = vadd.f32 %v1375, %v466
        %v1384 = vadd.f32 %v1376, %v467
        %v1385 = vadd.f32 %v1377, %v468
        %1386 = vst [vmem:[%s232] sm:$0xff] %v1378
        %1387 = vst [vmem:[%s232 + $0x8] sm:$0xff] %v1379
        %1388 = vst [vmem:[%s232 + $0x10] sm:$0xff] %v1380
        %1389 = vst [vmem:[%s232 + $0x18] sm:$0xff] %v1381
        %1390 = vst [vmem:[%s232 + $0x20] sm:$0xff] %v1382
        %1391 = vst [vmem:[%s232 + $0x28] sm:$0xff] %v1383
        %1392 = vst [vmem:[%s232 + $0x30] sm:$0xff] %v1384
        %1393 = vst [vmem:[%s232 + $0x38] sm:$0xff] %v1385
        %s1394 = sand.u32 %s152, 1
        %s1395 = scalar_lea.sflag [#allocation7], %s1394
        %s1396 = sand.u32 %s152, 1
        %s1397 = smul.addr %s1396, 64
        %s1398 = scalar_lea.vmem [#allocation6], %s1397
        // Predicated region
        $region45: #{tpu_custom_call.1} parent=39 // pred_check
          %p1399 = pneg %p162
        $region46: #{tpu_custom_call.1} parent=39 // pred_check_branch
          %1401 = sbr.rel (%p1399) target = $region48
        $region47: #{tpu_custom_call.1} parent=39 // pred_region
          %s1402 = smul.u32 2, %s25
          %s1404 = ssub.s32 1024, 1024
          %1405 = vsyncadd %s1395, %s1404
          %s1406 = smul.addr %s24, 8
          %s1407 = sadd.s32 %s1402, %s1406
          %s1408 = smul.addr %s1407, 128
          %s1409 = scalar_lea.hbm %s5, %s1408
          %s1410 = sshll.u32 %s1398, 4
          %s1411 = int_to_ptr.vmem [resolvable:$true] %s1410
          %1416 = dma.vmem_to_hbm [thread:$0]  %s1411, 1024, %s1409, %s1395, 256, 256, 16
        $region48: #{tpu_custom_call.1} parent=39 // pred_fallthru
          _
      $region40: #{tpu_custom_call.1} parent=5 // pred_fallthru
        _
      %p1417 = scmp.le.s32.totalorder 2, %s15
      // Predicated region
      $region49: #{tpu_custom_call.1} parent=5 // pred_check
        %p1418 = pneg %p1417
      $region50: #{tpu_custom_call.1} parent=5 // pred_check_branch
        %1420 = sbr.rel (%p1418) target = $region52
      $region51: #{tpu_custom_call.1} parent=5 // pred_region
        %s1421 = ssub.s32 %s15, 2
        // Predicated region
        $region53: #{tpu_custom_call.1} parent=51 // pred_check
          %p1422 = pneg %p168
        $region54: #{tpu_custom_call.1} parent=51 // pred_check_branch
          %1424 = sbr.rel (%p1422) target = $region56
        $region55: #{tpu_custom_call.1} parent=51 // pred_region
          %s1425 = sand.u32 %s153, 1
          %s1426 = scalar_lea.sflag [#allocation7], %s1425
          %s1427 = sand.u32 %s153, 1
          %s1428 = smul.addr %s1427, 64
          %s1429 = scalar_lea.vmem [#allocation6], %s1428
          %1430 = dma.done %s1426, 1024
        $region56: #{tpu_custom_call.1} parent=51 // pred_fallthru
          _
      $region52: #{tpu_custom_call.1} parent=5 // pred_fallthru
        _
    $region6: #{tpu_custom_call.1} parent=1 // loop_footer
      %s19 = sadd.s32 1, %s15
    $region7: #{tpu_custom_call.1} parent=1 // loop_footer_branch
      %14 = sbr.rel target = $region3
    $region8: #{tpu_custom_call.1} parent=1 // loop_exit
      _
    %1431 = vsyncpa [#allocation7], 1
    %s1432 = scalar_lea.sflag [#allocation7], 1
    %1433 = vsyncpa %s1432, 1

</llo_original>
